<compile_context>
chip_gen: v7x
topology: tpu7x:2x2x1
jax: 0.10.0
libtpu: 0.0.40
codegen_flags: <defaults>
</compile_context>

<pallas_src>
import jax
import jax.numpy as jnp
from jax import lax
from jax.experimental import pallas as pl
from jax.experimental.pallas import tpu as pltpu


_PAD = 128  # lane padding on each side of the flattened (H*W) image, >= W+1


def _make_basic_block_kernel(H, W, C):
    HW = H * W
    assert W + 1 <= _PAD, "image width too large for the fixed lane padding"

    def kernel(x_ref, w1_ref, b1_ref, w2_ref, b2_ref, out_ref, pad_ref, col_ref):
        # Column-boundary masks: in the flattened H*W lane axis, a w +/- 1 read
        # at the row edge wraps into the neighbouring row and must be zeroed.
        w_idx = lax.broadcasted_iota(jnp.int32, (1, HW), 1) % W
        not_left = w_idx >= 1            # reading (w-1) stays inside the image
        not_right = w_idx < (W - 1)      # reading (w+1) stays inside the image

        def tap(dh, dw):
            # (C, HW) tile whose value at pixel (h, w) is padded[h+dh, w+dw]
            # of whatever currently sits in pad_ref's interior (zero outside).
            start = _PAD + dh * W + dw
            u = pad_ref[:, start:start + HW]
            if dw == -1:
                u = jnp.where(not_left, u, 0.0)
            elif dw == 1:
                u = jnp.where(not_right, u, 0.0)
            return u

        # ---- stage zero-padded x in VMEM (padding done in-kernel) ----
        pad_ref[:, :_PAD] = jnp.zeros((C, _PAD), jnp.float32)
        pad_ref[:, _PAD + HW:_PAD + HW + _PAD] = jnp.zeros((C, _PAD), jnp.float32)
        pad_ref[:, _PAD:_PAD + HW] = x_ref[0]

        # ---- conv1 + bn1 + relu: single im2col matmul on the MXU ----
        # col_ref[(kh*3+kw)*C + ci, p] = x[ci, h+kh-1, w+kw-1]  (bf16)
        for kh in range(3):
            for kw in range(3):
                t = kh * 3 + kw
                col_ref[t * C:(t + 1) * C, :] = (
                    tap(kh - 1, kw - 1).astype(col_ref.dtype))
        # (C, 9C) @ (9C, HW) -> (C, HW); bn1 scale pre-folded into w1.
        y1 = jnp.dot(w1_ref[...], col_ref[...],
                     preferred_element_type=jnp.float32)
        y1 = jnp.maximum(y1 + b1_ref[...], 0.0)

        # ---- conv2 (depthwise, groups == C) + bn2 scale on the VPU ----
        pad_ref[:, _PAD:_PAD + HW] = y1          # pad borders are still zero
        acc = jnp.zeros((C, HW), jnp.float32)
        for kh in range(3):
            for kw in range(3):
                t = kh * 3 + kw
                acc = acc + w2_ref[t] * tap(kh - 1, kw - 1)

        # ---- bn2 bias + residual + relu, lane-dense store ----
        out_ref[0] = jnp.maximum(acc + b2_ref[...] + x_ref[0], 0.0).astype(
            out_ref.dtype)

    return kernel


def _fold_bn(gamma, beta, mean, var, eps=1e-5):
    scale = gamma / jnp.sqrt(var + eps)
    bias = beta - mean * scale
    return scale, bias


def _prep_conv1_weights(w_oihw, bn_scale):
    # (Cout, Cin, 3, 3) -> (Cout, 9*Cin), bn1 scale folded in, bf16 for the MXU.
    Cout, Cin = w_oihw.shape[0], w_oihw.shape[1]
    wm = jnp.transpose(w_oihw, (0, 2, 3, 1)).reshape(Cout, 9 * Cin)
    return (wm * bn_scale[:, None]).astype(jnp.bfloat16)


def _prep_conv2_depthwise_weights(w_group, bn_scale):
    # (C, 1, 3, 3) depthwise -> (9, C, 1) f32, bn2 scale folded in.
    C = w_group.shape[0]
    wt = w_group.reshape(C, 9) * bn_scale[:, None]
    return jnp.transpose(wt, (1, 0)).reshape(9, C, 1)


def basic_block_forward(x_nchw, params, num_group):
    """BasicBlock forward. x_nchw: (N, C, H, W) f32; stride=1, no downsample."""
    N, C, H, W = x_nchw.shape
    HW = H * W
    assert params["conv1_w"].shape == (C, C, 3, 3)
    # groups == channels -> depthwise conv2 (the default BasicBlock config).
    assert num_group == C and params["conv2_w"].shape == (C, 1, 3, 3), (
        "only the depthwise (num_group == planes) grouped conv is implemented")

    s1, b1 = _fold_bn(params["bn1_gamma"], params["bn1_beta"],
                      params["bn1_mean"], params["bn1_var"])
    s2, b2 = _fold_bn(params["bn2_gamma"], params["bn2_beta"],
                      params["bn2_mean"], params["bn2_var"])
    w1m = _prep_conv1_weights(params["conv1_w"], s1)             # (C, 9C) bf16
    w2d = _prep_conv2_depthwise_weights(params["conv2_w"], s2)   # (9, C, 1) f32
    b1 = b1.reshape(C, 1).astype(jnp.float32)
    b2 = b2.reshape(C, 1).astype(jnp.float32)

    x_flat = x_nchw.reshape(N, C, HW)   # NCHW with H,W merged -> lane-dense

    kernel = _make_basic_block_kernel(H, W, C)
    out = pl.pallas_call(
        kernel,
        out_shape=jax.ShapeDtypeStruct((N, C, HW), jnp.float32),
        grid_spec=pltpu.PrefetchScalarGridSpec(
            num_scalar_prefetch=0,
            grid=(N,),
            in_specs=[
                pl.BlockSpec((1, C, HW), lambda n: (n, 0, 0)),     # x
                pl.BlockSpec((C, 9 * C), lambda n: (0, 0)),        # conv1 w (bf16)
                pl.BlockSpec((C, 1), lambda n: (0, 0)),            # bn1 bias
                pl.BlockSpec((9, C, 1), lambda n: (0, 0, 0)),      # conv2 dw w
                pl.BlockSpec((C, 1), lambda n: (0, 0)),            # bn2 bias
            ],
            out_specs=pl.BlockSpec((1, C, HW), lambda n: (n, 0, 0)),
            scratch_shapes=[
                pltpu.VMEM((C, 2 * _PAD + HW), jnp.float32),       # padded image
                pltpu.VMEM((9 * C, HW), jnp.bfloat16),             # im2col tile
            ],
        ),
        compiler_params=pltpu.CompilerParams(
            dimension_semantics=("parallel",)),
    )(x_flat, w1m, b1, w2d, b2)
    return out.reshape(N, C, H, W)


def _reference_forward(x_nchw, params, num_group):
    """Pure-JAX reference (lax.conv) for correctness checking."""
    def conv(x, w, groups=1):
        return lax.conv_general_dilated(
            x, w, window_strides=(1, 1), padding=((1, 1), (1, 1)),
            dimension_numbers=("NCHW", "OIHW", "NCHW"),
            feature_group_count=groups)

    def bn(x, g, b, m, v, eps=1e-5):
        g, b, m, v = (t.reshape(1, -1, 1, 1) for t in (g, b, m, v))
        return (x - m) / jnp.sqrt(v + eps) * g + b

    out = jnp.maximum(bn(conv(x_nchw, params["conv1_w"]),
                         params["bn1_gamma"], params["bn1_beta"],
                         params["bn1_mean"], params["bn1_var"]), 0.0)
    out = bn(conv(out, params["conv2_w"], groups=num_group),
             params["bn2_gamma"], params["bn2_beta"],
             params["bn2_mean"], params["bn2_var"])
    return jnp.maximum(out + x_nchw, 0.0)


if __name__ == "__main__":
    N, C, H, W = 2, 32, 16, 16          # inplanes = planes = 32
    num_group = 32                       # default; planes % num_group == 0

    keys = jax.random.split(jax.random.PRNGKey(0), 11)
    params = {
        "conv1_w": 0.1 * jax.random.normal(keys[0], (C, C, 3, 3), jnp.float32),
        "bn1_gamma": 1.0 + 0.1 * jax.random.normal(keys[1], (C,), jnp.float32),
        "bn1_beta": 0.1 * jax.random.normal(keys[2], (C,), jnp.float32),
        "bn1_mean": 0.1 * jax.random.normal(keys[3], (C,), jnp.float32),
        "bn1_var": jnp.abs(1.0 + 0.1 * jax.random.normal(keys[4], (C,), jnp.float32)),
        "conv2_w": 0.1 * jax.random.normal(keys[5], (C, C // num_group, 3, 3),
                                           jnp.float32),
        "bn2_gamma": 1.0 + 0.1 * jax.random.normal(keys[6], (C,), jnp.float32),
        "bn2_beta": 0.1 * jax.random.normal(keys[7], (C,), jnp.float32),
        "bn2_mean": 0.1 * jax.random.normal(keys[8], (C,), jnp.float32),
        "bn2_var": jnp.abs(1.0 + 0.1 * jax.random.normal(keys[9], (C,), jnp.float32)),
    }
    x = jax.random.normal(keys[10], (N, C, H, W), jnp.float32)

    out = jax.block_until_ready(
        jax.jit(basic_block_forward, static_argnums=2)(x, params, num_group))
    ref = jax.block_until_ready(
        jax.jit(_reference_forward, static_argnums=2)(x, params, num_group))

    assert out.shape == (N, C, H, W), out.shape
    max_err = float(jnp.max(jnp.abs(out - ref)))
    # conv1 runs in bf16 on the MXU -> tolerance loosened vs the f32 reference.
    assert jnp.allclose(out, ref, atol=5e-2, rtol=5e-2), max_err
    print("KERNEL_OK")
</pallas_src>

<mosaic_0001>
module attributes {stable_mosaic.version = 11 : i64} {
  func.func @kernel(%arg0: i32, %arg1: memref<1x32x256xf32, #tpu.memory_space<vmem>>, %arg2: memref<32x288xbf16, #tpu.memory_space<vmem>>, %arg3: memref<32x1xf32, #tpu.memory_space<vmem>>, %arg4: memref<9x32x1xf32, #tpu.memory_space<vmem>>, %arg5: memref<32x1xf32, #tpu.memory_space<vmem>>, %arg6: memref<1x32x256xf32, #tpu.memory_space<vmem>>, %arg7: memref<32x512xf32, #tpu.memory_space<vmem>>, %arg8: memref<288x256xbf16, #tpu.memory_space<vmem>>) attributes {dimension_semantics = [#tpu.dimension_semantics<parallel>], iteration_bounds = array<i64: 2>, scalar_prefetch = 0 : i64, scratch_operands = 2 : i64, tpu.core_type = #tpu.core_type<tc>, window_params = [{transform_indices = @transform_0, window_bounds = array<i64: 1, 32, 256>}, {pipeline_mode = #tpu.pipeline_mode<synchronous>, transform_indices = @transform_1, window_bounds = array<i64: 32, 288>}, {pipeline_mode = #tpu.pipeline_mode<synchronous>, transform_indices = @transform_2, window_bounds = array<i64: 32, 1>}, {pipeline_mode = #tpu.pipeline_mode<synchronous>, transform_indices = @transform_3, window_bounds = array<i64: 9, 32, 1>}, {pipeline_mode = #tpu.pipeline_mode<synchronous>, transform_indices = @transform_4, window_bounds = array<i64: 32, 1>}, {transform_indices = @transform_5, window_bounds = array<i64: 1, 32, 256>}]} {
    %0 = tpu.iota {dimensions = array<i32: 1>} : vector<1x256xi32>
    %c16_i32 = arith.constant 16 : i32
    %c0_i32 = arith.constant 0 : i32
    %1 = arith.cmpi eq, %c16_i32, %c0_i32 : i32
    %c1_i32 = arith.constant 1 : i32
    %2 = arith.select %1, %c1_i32, %c16_i32 : i32
    %3 = vector.broadcast %2 : i32 to vector<1x256xi32>
    %4 = arith.remsi %0, %3 : vector<1x256xi32>
    %c0_i32_0 = arith.constant 0 : i32
    %5 = vector.broadcast %c0_i32_0 : i32 to vector<1x256xi32>
    %6 = arith.cmpi ne, %4, %5 : vector<1x256xi32>
    %c0_i32_1 = arith.constant 0 : i32
    %7 = vector.broadcast %c0_i32_1 : i32 to vector<1x256xi32>
    %8 = arith.cmpi slt, %4, %7 : vector<1x256xi32>
    %c0_i32_2 = arith.constant 0 : i32
    %9 = arith.cmpi slt, %2, %c0_i32_2 : i32
    %10 = vector.broadcast %9 : i1 to vector<1x256xi1>
    %11 = vector.broadcast %10 : vector<1x256xi1> to vector<1x256xi1>
    %12 = arith.xori %8, %11 : vector<1x256xi1>
    %13 = arith.andi %12, %6 : vector<1x256xi1>
    %14 = vector.broadcast %2 : i32 to vector<1x256xi32>
    %15 = arith.addi %4, %14 : vector<1x256xi32>
    %16 = arith.select %13, %15, %4 : vector<1x256xi1>, vector<1x256xi32>
    %c1_i32_3 = arith.constant 1 : i32
    %17 = vector.broadcast %c1_i32_3 : i32 to vector<1x256xi32>
    %18 = arith.cmpi sge, %16, %17 : vector<1x256xi32>
    %c15_i32 = arith.constant 15 : i32
    %19 = vector.broadcast %c15_i32 : i32 to vector<1x256xi32>
    %20 = arith.cmpi slt, %16, %19 : vector<1x256xi32>
    %cst = arith.constant 0.000000e+00 : f32
    %21 = vector.broadcast %cst : f32 to vector<32x128xf32>
    %c0 = arith.constant 0 : index
    %c0_4 = arith.constant 0 : index
    %22 = vector.load %arg7[%c0, %c0_4] : memref<32x512xf32, #tpu.memory_space<vmem>>, vector<32x128xf32>
    tpu.vector_store %arg7[%c0, %c0_4], %21 {strides = array<i32>} : memref<32x512xf32, #tpu.memory_space<vmem>>, vector<32x128xf32>,
    %cst_5 = arith.constant 0.000000e+00 : f32
    %23 = vector.broadcast %cst_5 : f32 to vector<32x128xf32>
    %c0_6 = arith.constant 0 : index
    %c384 = arith.constant 384 : index
    %24 = vector.load %arg7[%c0_6, %c384] : memref<32x512xf32, #tpu.memory_space<vmem>>, vector<32x128xf32>
    tpu.vector_store %arg7[%c0_6, %c384], %23 {strides = array<i32>} : memref<32x512xf32, #tpu.memory_space<vmem>>, vector<32x128xf32>,
    %c0_7 = arith.constant 0 : index
    %c0_8 = arith.constant 0 : index
    %c0_9 = arith.constant 0 : index
    %25 = vector.load %arg1[%c0_7, %c0_8, %c0_9] : memref<1x32x256xf32, #tpu.memory_space<vmem>>, vector<1x32x256xf32>
    %26 = vector.shape_cast %25 : vector<1x32x256xf32> to vector<32x256xf32>
    %c0_10 = arith.constant 0 : index
    %c128 = arith.constant 128 : index
    %27 = vector.load %arg7[%c0_10, %c128] : memref<32x512xf32, #tpu.memory_space<vmem>>, vector<32x256xf32>
    tpu.vector_store %arg7[%c0_10, %c128], %26 {strides = array<i32>} : memref<32x512xf32, #tpu.memory_space<vmem>>, vector<32x256xf32>,
    %c0_11 = arith.constant 0 : index
    %c111 = arith.constant 111 : index
    %28 = vector.load %arg7[%c0_11, %c111] : memref<32x512xf32, #tpu.memory_space<vmem>>, vector<32x256xf32>
    %cst_12 = arith.constant 0.000000e+00 : f32
    %29 = vector.shape_cast %18 : vector<1x256xi1> to vector<1x256xi1>
    %30 = vector.broadcast %29 : vector<1x256xi1> to vector<32x256xi1>
    %31 = vector.broadcast %cst_12 : f32 to vector<32x256xf32>
    %32 = arith.select %30, %28, %31 : vector<32x256xi1>, vector<32x256xf32>
    %33 = arith.truncf %32 : vector<32x256xf32> to vector<32x256xbf16>
    %c0_13 = arith.constant 0 : index
    %c0_14 = arith.constant 0 : index
    %34 = vector.load %arg8[%c0_13, %c0_14] : memref<288x256xbf16, #tpu.memory_space<vmem>>, vector<32x256xbf16>
    tpu.vector_store %arg8[%c0_13, %c0_14], %33 {strides = array<i32>} : memref<288x256xbf16, #tpu.memory_space<vmem>>, vector<32x256xbf16>,
    %c0_15 = arith.constant 0 : index
    %c112 = arith.constant 112 : index
    %35 = vector.load %arg7[%c0_15, %c112] : memref<32x512xf32, #tpu.memory_space<vmem>>, vector<32x256xf32>
    %36 = arith.truncf %35 : vector<32x256xf32> to vector<32x256xbf16>
    %c32 = arith.constant 32 : index
    %c0_16 = arith.constant 0 : index
    %37 = vector.load %arg8[%c32, %c0_16] : memref<288x256xbf16, #tpu.memory_space<vmem>>, vector<32x256xbf16>
    tpu.vector_store %arg8[%c32, %c0_16], %36 {strides = array<i32>} : memref<288x256xbf16, #tpu.memory_space<vmem>>, vector<32x256xbf16>,
    %c0_17 = arith.constant 0 : index
    %c113 = arith.constant 113 : index
    %38 = vector.load %arg7[%c0_17, %c113] : memref<32x512xf32, #tpu.memory_space<vmem>>, vector<32x256xf32>
    %cst_18 = arith.constant 0.000000e+00 : f32
    %39 = vector.shape_cast %20 : vector<1x256xi1> to vector<1x256xi1>
    %40 = vector.broadcast %39 : vector<1x256xi1> to vector<32x256xi1>
    %41 = vector.broadcast %cst_18 : f32 to vector<32x256xf32>
    %42 = arith.select %40, %38, %41 : vector<32x256xi1>, vector<32x256xf32>
    %43 = arith.truncf %42 : vector<32x256xf32> to vector<32x256xbf16>
    %c64 = arith.constant 64 : index
    %c0_19 = arith.constant 0 : index
    %44 = vector.load %arg8[%c64, %c0_19] : memref<288x256xbf16, #tpu.memory_space<vmem>>, vector<32x256xbf16>
    tpu.vector_store %arg8[%c64, %c0_19], %43 {strides = array<i32>} : memref<288x256xbf16, #tpu.memory_space<vmem>>, vector<32x256xbf16>,
    %c0_20 = arith.constant 0 : index
    %c127 = arith.constant 127 : index
    %45 = vector.load %arg7[%c0_20, %c127] : memref<32x512xf32, #tpu.memory_space<vmem>>, vector<32x256xf32>
    %cst_21 = arith.constant 0.000000e+00 : f32
    %46 = vector.shape_cast %18 : vector<1x256xi1> to vector<1x256xi1>
    %47 = vector.broadcast %46 : vector<1x256xi1> to vector<32x256xi1>
    %48 = vector.broadcast %cst_21 : f32 to vector<32x256xf32>
    %49 = arith.select %47, %45, %48 : vector<32x256xi1>, vector<32x256xf32>
    %50 = arith.truncf %49 : vector<32x256xf32> to vector<32x256xbf16>
    %c96 = arith.constant 96 : index
    %c0_22 = arith.constant 0 : index
    %51 = vector.load %arg8[%c96, %c0_22] : memref<288x256xbf16, #tpu.memory_space<vmem>>, vector<32x256xbf16>
    tpu.vector_store %arg8[%c96, %c0_22], %50 {strides = array<i32>} : memref<288x256xbf16, #tpu.memory_space<vmem>>, vector<32x256xbf16>,
    %c0_23 = arith.constant 0 : index
    %c128_24 = arith.constant 128 : index
    %52 = vector.load %arg7[%c0_23, %c128_24] : memref<32x512xf32, #tpu.memory_space<vmem>>, vector<32x256xf32>
    %53 = arith.truncf %52 : vector<32x256xf32> to vector<32x256xbf16>
    %c128_25 = arith.constant 128 : index
    %c0_26 = arith.constant 0 : index
    %54 = vector.load %arg8[%c128_25, %c0_26] : memref<288x256xbf16, #tpu.memory_space<vmem>>, vector<32x256xbf16>
    tpu.vector_store %arg8[%c128_25, %c0_26], %53 {strides = array<i32>} : memref<288x256xbf16, #tpu.memory_space<vmem>>, vector<32x256xbf16>,
    %c0_27 = arith.constant 0 : index
    %c129 = arith.constant 129 : index
    %55 = vector.load %arg7[%c0_27, %c129] : memref<32x512xf32, #tpu.memory_space<vmem>>, vector<32x256xf32>
    %cst_28 = arith.constant 0.000000e+00 : f32
    %56 = vector.shape_cast %20 : vector<1x256xi1> to vector<1x256xi1>
    %57 = vector.broadcast %56 : vector<1x256xi1> to vector<32x256xi1>
    %58 = vector.broadcast %cst_28 : f32 to vector<32x256xf32>
    %59 = arith.select %57, %55, %58 : vector<32x256xi1>, vector<32x256xf32>
    %60 = arith.truncf %59 : vector<32x256xf32> to vector<32x256xbf16>
    %c160 = arith.constant 160 : index
    %c0_29 = arith.constant 0 : index
    %61 = vector.load %arg8[%c160, %c0_29] : memref<288x256xbf16, #tpu.memory_space<vmem>>, vector<32x256xbf16>
    tpu.vector_store %arg8[%c160, %c0_29], %60 {strides = array<i32>} : memref<288x256xbf16, #tpu.memory_space<vmem>>, vector<32x256xbf16>,
    %c0_30 = arith.constant 0 : index
    %c143 = arith.constant 143 : index
    %62 = vector.load %arg7[%c0_30, %c143] : memref<32x512xf32, #tpu.memory_space<vmem>>, vector<32x256xf32>
    %cst_31 = arith.constant 0.000000e+00 : f32
    %63 = vector.shape_cast %18 : vector<1x256xi1> to vector<1x256xi1>
    %64 = vector.broadcast %63 : vector<1x256xi1> to vector<32x256xi1>
    %65 = vector.broadcast %cst_31 : f32 to vector<32x256xf32>
    %66 = arith.select %64, %62, %65 : vector<32x256xi1>, vector<32x256xf32>
    %67 = arith.truncf %66 : vector<32x256xf32> to vector<32x256xbf16>
    %c192 = arith.constant 192 : index
    %c0_32 = arith.constant 0 : index
    %68 = vector.load %arg8[%c192, %c0_32] : memref<288x256xbf16, #tpu.memory_space<vmem>>, vector<32x256xbf16>
    tpu.vector_store %arg8[%c192, %c0_32], %67 {strides = array<i32>} : memref<288x256xbf16, #tpu.memory_space<vmem>>, vector<32x256xbf16>,
    %c0_33 = arith.constant 0 : index
    %c144 = arith.constant 144 : index
    %69 = vector.load %arg7[%c0_33, %c144] : memref<32x512xf32, #tpu.memory_space<vmem>>, vector<32x256xf32>
    %70 = arith.truncf %69 : vector<32x256xf32> to vector<32x256xbf16>
    %c224 = arith.constant 224 : index
    %c0_34 = arith.constant 0 : index
    %71 = vector.load %arg8[%c224, %c0_34] : memref<288x256xbf16, #tpu.memory_space<vmem>>, vector<32x256xbf16>
    tpu.vector_store %arg8[%c224, %c0_34], %70 {strides = array<i32>} : memref<288x256xbf16, #tpu.memory_space<vmem>>, vector<32x256xbf16>,
    %c0_35 = arith.constant 0 : index
    %c145 = arith.constant 145 : index
    %72 = vector.load %arg7[%c0_35, %c145] : memref<32x512xf32, #tpu.memory_space<vmem>>, vector<32x256xf32>
    %cst_36 = arith.constant 0.000000e+00 : f32
    %73 = vector.shape_cast %20 : vector<1x256xi1> to vector<1x256xi1>
    %74 = vector.broadcast %73 : vector<1x256xi1> to vector<32x256xi1>
    %75 = vector.broadcast %cst_36 : f32 to vector<32x256xf32>
    %76 = arith.select %74, %72, %75 : vector<32x256xi1>, vector<32x256xf32>
    %77 = arith.truncf %76 : vector<32x256xf32> to vector<32x256xbf16>
    %c256 = arith.constant 256 : index
    %c0_37 = arith.constant 0 : index
    %78 = vector.load %arg8[%c256, %c0_37] : memref<288x256xbf16, #tpu.memory_space<vmem>>, vector<32x256xbf16>
    tpu.vector_store %arg8[%c256, %c0_37], %77 {strides = array<i32>} : memref<288x256xbf16, #tpu.memory_space<vmem>>, vector<32x256xbf16>,
    %c0_38 = arith.constant 0 : index
    %c0_39 = arith.constant 0 : index
    %79 = vector.load %arg2[%c0_38, %c0_39] : memref<32x288xbf16, #tpu.memory_space<vmem>>, vector<32x288xbf16>
    %c0_40 = arith.constant 0 : index
    %c0_41 = arith.constant 0 : index
    %80 = vector.load %arg8[%c0_40, %c0_41] : memref<288x256xbf16, #tpu.memory_space<vmem>>, vector<288x256xbf16>
    %cst_42 = arith.constant dense<0.000000e+00> : vector<32x256xf32>
    %81 = tpu.matmul %79, %80, %cst_42 {dimension_numbers = #tpu.dot_dimension_numbers<[1], [0], [0], [1], [0, 0, 1, 1], [], []>} : vector<32x288xbf16>, vector<288x256xbf16>, vector<32x256xf32> -> vector<32x256xf32>
    %c0_43 = arith.constant 0 : index
    %c0_44 = arith.constant 0 : index
    %82 = vector.load %arg3[%c0_43, %c0_44] : memref<32x1xf32, #tpu.memory_space<vmem>>, vector<32x1xf32>
    %83 = vector.broadcast %82 : vector<32x1xf32> to vector<32x256xf32>
    %84 = arith.addf %81, %83 : vector<32x256xf32>
    %cst_45 = arith.constant 0.000000e+00 : f32
    %85 = vector.broadcast %cst_45 : f32 to vector<32x256xf32>
    %86 = arith.maximumf %84, %85 : vector<32x256xf32>
    %c0_46 = arith.constant 0 : index
    %c128_47 = arith.constant 128 : index
    %87 = vector.load %arg7[%c0_46, %c128_47] : memref<32x512xf32, #tpu.memory_space<vmem>>, vector<32x256xf32>
    tpu.vector_store %arg7[%c0_46, %c128_47], %86 {strides = array<i32>} : memref<32x512xf32, #tpu.memory_space<vmem>>, vector<32x256xf32>,
    %cst_48 = arith.constant 0.000000e+00 : f32
    %88 = vector.broadcast %cst_48 : f32 to vector<32x256xf32>
    %c0_49 = arith.constant 0 : index
    %c0_50 = arith.constant 0 : index
    %c0_51 = arith.constant 0 : index
    %89 = vector.load %arg4[%c0_49, %c0_50, %c0_51] : memref<9x32x1xf32, #tpu.memory_space<vmem>>, vector<1x32x1xf32>
    %90 = vector.shape_cast %89 : vector<1x32x1xf32> to vector<32x1xf32>
    %c0_52 = arith.constant 0 : index
    %c111_53 = arith.constant 111 : index
    %91 = vector.load %arg7[%c0_52, %c111_53] : memref<32x512xf32, #tpu.memory_space<vmem>>, vector<32x256xf32>
    %cst_54 = arith.constant 0.000000e+00 : f32
    %92 = vector.shape_cast %18 : vector<1x256xi1> to vector<1x256xi1>
    %93 = vector.broadcast %92 : vector<1x256xi1> to vector<32x256xi1>
    %94 = vector.broadcast %cst_54 : f32 to vector<32x256xf32>
    %95 = arith.select %93, %91, %94 : vector<32x256xi1>, vector<32x256xf32>
    %96 = vector.broadcast %90 : vector<32x1xf32> to vector<32x256xf32>
    %97 = arith.mulf %96, %95 : vector<32x256xf32>
    %98 = arith.addf %88, %97 : vector<32x256xf32>
    %c1 = arith.constant 1 : index
    %c0_55 = arith.constant 0 : index
    %c0_56 = arith.constant 0 : index
    %99 = vector.load %arg4[%c1, %c0_55, %c0_56] : memref<9x32x1xf32, #tpu.memory_space<vmem>>, vector<1x32x1xf32>
    %100 = vector.shape_cast %99 : vector<1x32x1xf32> to vector<32x1xf32>
    %c0_57 = arith.constant 0 : index
    %c112_58 = arith.constant 112 : index
    %101 = vector.load %arg7[%c0_57, %c112_58] : memref<32x512xf32, #tpu.memory_space<vmem>>, vector<32x256xf32>
    %102 = vector.broadcast %100 : vector<32x1xf32> to vector<32x256xf32>
    %103 = arith.mulf %102, %101 : vector<32x256xf32>
    %104 = arith.addf %98, %103 : vector<32x256xf32>
    %c2 = arith.constant 2 : index
    %c0_59 = arith.constant 0 : index
    %c0_60 = arith.constant 0 : index
    %105 = vector.load %arg4[%c2, %c0_59, %c0_60] : memref<9x32x1xf32, #tpu.memory_space<vmem>>, vector<1x32x1xf32>
    %106 = vector.shape_cast %105 : vector<1x32x1xf32> to vector<32x1xf32>
    %c0_61 = arith.constant 0 : index
    %c113_62 = arith.constant 113 : index
    %107 = vector.load %arg7[%c0_61, %c113_62] : memref<32x512xf32, #tpu.memory_space<vmem>>, vector<32x256xf32>
    %cst_63 = arith.constant 0.000000e+00 : f32
    %108 = vector.shape_cast %20 : vector<1x256xi1> to vector<1x256xi1>
    %109 = vector.broadcast %108 : vector<1x256xi1> to vector<32x256xi1>
    %110 = vector.broadcast %cst_63 : f32 to vector<32x256xf32>
    %111 = arith.select %109, %107, %110 : vector<32x256xi1>, vector<32x256xf32>
    %112 = vector.broadcast %106 : vector<32x1xf32> to vector<32x256xf32>
    %113 = arith.mulf %112, %111 : vector<32x256xf32>
    %114 = arith.addf %104, %113 : vector<32x256xf32>
    %c3 = arith.constant 3 : index
    %c0_64 = arith.constant 0 : index
    %c0_65 = arith.constant 0 : index
    %115 = vector.load %arg4[%c3, %c0_64, %c0_65] : memref<9x32x1xf32, #tpu.memory_space<vmem>>, vector<1x32x1xf32>
    %116 = vector.shape_cast %115 : vector<1x32x1xf32> to vector<32x1xf32>
    %c0_66 = arith.constant 0 : index
    %c127_67 = arith.constant 127 : index
    %117 = vector.load %arg7[%c0_66, %c127_67] : memref<32x512xf32, #tpu.memory_space<vmem>>, vector<32x256xf32>
    %cst_68 = arith.constant 0.000000e+00 : f32
    %118 = vector.shape_cast %18 : vector<1x256xi1> to vector<1x256xi1>
    %119 = vector.broadcast %118 : vector<1x256xi1> to vector<32x256xi1>
    %120 = vector.broadcast %cst_68 : f32 to vector<32x256xf32>
    %121 = arith.select %119, %117, %120 : vector<32x256xi1>, vector<32x256xf32>
    %122 = vector.broadcast %116 : vector<32x1xf32> to vector<32x256xf32>
    %123 = arith.mulf %122, %121 : vector<32x256xf32>
    %124 = arith.addf %114, %123 : vector<32x256xf32>
    %c4 = arith.constant 4 : index
    %c0_69 = arith.constant 0 : index
    %c0_70 = arith.constant 0 : index
    %125 = vector.load %arg4[%c4, %c0_69, %c0_70] : memref<9x32x1xf32, #tpu.memory_space<vmem>>, vector<1x32x1xf32>
    %126 = vector.shape_cast %125 : vector<1x32x1xf32> to vector<32x1xf32>
    %c0_71 = arith.constant 0 : index
    %c128_72 = arith.constant 128 : index
    %127 = vector.load %arg7[%c0_71, %c128_72] : memref<32x512xf32, #tpu.memory_space<vmem>>, vector<32x256xf32>
    %128 = vector.broadcast %126 : vector<32x1xf32> to vector<32x256xf32>
    %129 = arith.mulf %128, %127 : vector<32x256xf32>
    %130 = arith.addf %124, %129 : vector<32x256xf32>
    %c5 = arith.constant 5 : index
    %c0_73 = arith.constant 0 : index
    %c0_74 = arith.constant 0 : index
    %131 = vector.load %arg4[%c5, %c0_73, %c0_74] : memref<9x32x1xf32, #tpu.memory_space<vmem>>, vector<1x32x1xf32>
    %132 = vector.shape_cast %131 : vector<1x32x1xf32> to vector<32x1xf32>
    %c0_75 = arith.constant 0 : index
    %c129_76 = arith.constant 129 : index
    %133 = vector.load %arg7[%c0_75, %c129_76] : memref<32x512xf32, #tpu.memory_space<vmem>>, vector<32x256xf32>
    %cst_77 = arith.constant 0.000000e+00 : f32
    %134 = vector.shape_cast %20 : vector<1x256xi1> to vector<1x256xi1>
    %135 = vector.broadcast %134 : vector<1x256xi1> to vector<32x256xi1>
    %136 = vector.broadcast %cst_77 : f32 to vector<32x256xf32>
    %137 = arith.select %135, %133, %136 : vector<32x256xi1>, vector<32x256xf32>
    %138 = vector.broadcast %132 : vector<32x1xf32> to vector<32x256xf32>
    %139 = arith.mulf %138, %137 : vector<32x256xf32>
    %140 = arith.addf %130, %139 : vector<32x256xf32>
    %c6 = arith.constant 6 : index
    %c0_78 = arith.constant 0 : index
    %c0_79 = arith.constant 0 : index
    %141 = vector.load %arg4[%c6, %c0_78, %c0_79] : memref<9x32x1xf32, #tpu.memory_space<vmem>>, vector<1x32x1xf32>
    %142 = vector.shape_cast %141 : vector<1x32x1xf32> to vector<32x1xf32>
    %c0_80 = arith.constant 0 : index
    %c143_81 = arith.constant 143 : index
    %143 = vector.load %arg7[%c0_80, %c143_81] : memref<32x512xf32, #tpu.memory_space<vmem>>, vector<32x256xf32>
    %cst_82 = arith.constant 0.000000e+00 : f32
    %144 = vector.shape_cast %18 : vector<1x256xi1> to vector<1x256xi1>
    %145 = vector.broadcast %144 : vector<1x256xi1> to vector<32x256xi1>
    %146 = vector.broadcast %cst_82 : f32 to vector<32x256xf32>
    %147 = arith.select %145, %143, %146 : vector<32x256xi1>, vector<32x256xf32>
    %148 = vector.broadcast %142 : vector<32x1xf32> to vector<32x256xf32>
    %149 = arith.mulf %148, %147 : vector<32x256xf32>
    %150 = arith.addf %140, %149 : vector<32x256xf32>
    %c7 = arith.constant 7 : index
    %c0_83 = arith.constant 0 : index
    %c0_84 = arith.constant 0 : index
    %151 = vector.load %arg4[%c7, %c0_83, %c0_84] : memref<9x32x1xf32, #tpu.memory_space<vmem>>, vector<1x32x1xf32>
    %152 = vector.shape_cast %151 : vector<1x32x1xf32> to vector<32x1xf32>
    %c0_85 = arith.constant 0 : index
    %c144_86 = arith.constant 144 : index
    %153 = vector.load %arg7[%c0_85, %c144_86] : memref<32x512xf32, #tpu.memory_space<vmem>>, vector<32x256xf32>
    %154 = vector.broadcast %152 : vector<32x1xf32> to vector<32x256xf32>
    %155 = arith.mulf %154, %153 : vector<32x256xf32>
    %156 = arith.addf %150, %155 : vector<32x256xf32>
    %c8 = arith.constant 8 : index
    %c0_87 = arith.constant 0 : index
    %c0_88 = arith.constant 0 : index
    %157 = vector.load %arg4[%c8, %c0_87, %c0_88] : memref<9x32x1xf32, #tpu.memory_space<vmem>>, vector<1x32x1xf32>
    %158 = vector.shape_cast %157 : vector<1x32x1xf32> to vector<32x1xf32>
    %c0_89 = arith.constant 0 : index
    %c145_90 = arith.constant 145 : index
    %159 = vector.load %arg7[%c0_89, %c145_90] : memref<32x512xf32, #tpu.memory_space<vmem>>, vector<32x256xf32>
    %cst_91 = arith.constant 0.000000e+00 : f32
    %160 = vector.shape_cast %20 : vector<1x256xi1> to vector<1x256xi1>
    %161 = vector.broadcast %160 : vector<1x256xi1> to vector<32x256xi1>
    %162 = vector.broadcast %cst_91 : f32 to vector<32x256xf32>
    %163 = arith.select %161, %159, %162 : vector<32x256xi1>, vector<32x256xf32>
    %164 = vector.broadcast %158 : vector<32x1xf32> to vector<32x256xf32>
    %165 = arith.mulf %164, %163 : vector<32x256xf32>
    %166 = arith.addf %156, %165 : vector<32x256xf32>
    %c0_92 = arith.constant 0 : index
    %c0_93 = arith.constant 0 : index
    %167 = vector.load %arg5[%c0_92, %c0_93] : memref<32x1xf32, #tpu.memory_space<vmem>>, vector<32x1xf32>
    %168 = vector.broadcast %167 : vector<32x1xf32> to vector<32x256xf32>
    %169 = arith.addf %166, %168 : vector<32x256xf32>
    %c0_94 = arith.constant 0 : index
    %c0_95 = arith.constant 0 : index
    %c0_96 = arith.constant 0 : index
    %170 = vector.load %arg1[%c0_94, %c0_95, %c0_96] : memref<1x32x256xf32, #tpu.memory_space<vmem>>, vector<1x32x256xf32>
    %171 = vector.shape_cast %170 : vector<1x32x256xf32> to vector<32x256xf32>
    %172 = arith.addf %169, %171 : vector<32x256xf32>
    %cst_97 = arith.constant 0.000000e+00 : f32
    %173 = vector.broadcast %cst_97 : f32 to vector<32x256xf32>
    %174 = arith.maximumf %172, %173 : vector<32x256xf32>
    %c0_98 = arith.constant 0 : index
    %c0_99 = arith.constant 0 : index
    %c0_100 = arith.constant 0 : index
    %175 = vector.load %arg6[%c0_98, %c0_99, %c0_100] : memref<1x32x256xf32, #tpu.memory_space<vmem>>, vector<1x32x256xf32>
    %176 = vector.shape_cast %175 : vector<1x32x256xf32> to vector<32x256xf32>
    %177 = vector.shape_cast %174 : vector<32x256xf32> to vector<1x32x256xf32>
    tpu.vector_store %arg6[%c0_98, %c0_99, %c0_100], %177 {strides = array<i32>} : memref<1x32x256xf32, #tpu.memory_space<vmem>>, vector<1x32x256xf32>,
    return
  }
  func.func @transform_0(%arg0: i32) -> (i32, i32, i32) {
    %c0_i32 = arith.constant 0 : i32
    %c0_i32_0 = arith.constant 0 : i32
    %c0_i32_1 = arith.constant 0 : i32
    return %arg0, %c0_i32, %c0_i32_0 : i32, i32, i32
  }
  func.func @transform_1(%arg0: i32) -> (i32, i32) {
    %c0_i32 = arith.constant 0 : i32
    %c0_i32_0 = arith.constant 0 : i32
    %c0_i32_1 = arith.constant 0 : i32
    return %c0_i32, %c0_i32_0 : i32, i32
  }
  func.func @transform_2(%arg0: i32) -> (i32, i32) {
    %c0_i32 = arith.constant 0 : i32
    %c0_i32_0 = arith.constant 0 : i32
    %c0_i32_1 = arith.constant 0 : i32
    return %c0_i32, %c0_i32_0 : i32, i32
  }
  func.func @transform_3(%arg0: i32) -> (i32, i32, i32) {
    %c0_i32 = arith.constant 0 : i32
    %c0_i32_0 = arith.constant 0 : i32
    %c0_i32_1 = arith.constant 0 : i32
    %c0_i32_2 = arith.constant 0 : i32
    return %c0_i32, %c0_i32_0, %c0_i32_1 : i32, i32, i32
  }
  func.func @transform_4(%arg0: i32) -> (i32, i32) {
    %c0_i32 = arith.constant 0 : i32
    %c0_i32_0 = arith.constant 0 : i32
    %c0_i32_1 = arith.constant 0 : i32
    return %c0_i32, %c0_i32_0 : i32, i32
  }
  func.func @transform_5(%arg0: i32) -> (i32, i32, i32) {
    %c0_i32 = arith.constant 0 : i32
    %c0_i32_0 = arith.constant 0 : i32
    %c0_i32_1 = arith.constant 0 : i32
    return %arg0, %c0_i32, %c0_i32_0 : i32, i32, i32
  }
}

</mosaic_0001>

<llo_original>
// kernel: basic_block_forward.1
$region0: #{basic_block_forward.1}
  #allocation0 [shape = 'u32[]', space=smem, size = 0x4, offset = 0x4, fixed_abs, tag = 'smem constant byte address 0x4 - core index']
  #allocation1 [shape = 'u32[144,128]{1,0:T(1,128)}', space=vmem, size = 0x12000, scoped, tag = 'internal scratch']
  #allocation2 [shape = 'f32[32,512]{1,0:T(8,128)}', space=vmem, size = 0x10000, scoped, tag = 'scratch operand']
  #allocation3 [shape = 'bf16[288,256]{1,0:T(16,128)(2,1)}', space=vmem, size = 0x24000, scoped, tag = 'scratch operand']
  %s0 = inlined_call_operand.vmem [shape: f32[2,32,256], index: 0, kind: input, shape index: {}]
  %s1 = inlined_call_operand.vmem [shape: bf16[32,288], index: 1, kind: input, shape index: {}]
  %s2 = inlined_call_operand.vmem [shape: f32[32,1], index: 2, kind: input, shape index: {}]
  %s3 = inlined_call_operand.vmem [shape: f32[9,32,1], index: 3, kind: input, shape index: {}]
  %s4 = inlined_call_operand.vmem [shape: f32[32,1], index: 4, kind: input, shape index: {}]
  %s5 = inlined_call_operand.vmem [shape: f32[2,32,256], index: 5, kind: output, shape index: {}]
  %s6 = sld [smem:[#allocation0]]
  $region53: #{basic_block_forward.1} parent=0
    _
  %s8 = ssub.s32 1, %s6
  %s9 = scalar_select 0, %s8, %s6
  loop: start=0, step=1, limit=4
  $region2: #{basic_block_forward.1} parent=0 // loop_pre_header
    _
  $region3: #{basic_block_forward.1} parent=0 // loop_header
    %s11 = sphi 0, %s15
    %p12 = scmp.ge.s32.totalorder %s11, 4
    %s21 = sphi 0, %s23
    %s24 = sphi 0, %s21
    %s25 = sphi 0, %s24
    %s41 = sphi 0, %s25
    %s45 = sphi 0, %s45
    %s47 = sphi 0, %s45
    %s48 = sphi 0, %s47
    %s62 = sphi 0, %s48
    %s66 = sphi 0, %s66
    %s68 = sphi 0, %s66
    %s69 = sphi 0, %s68
    %s83 = sphi 0, %s69
    %s87 = sphi 0, %s87
    %s89 = sphi 0, %s87
    %s90 = sphi 0, %s89
    %s104 = sphi 0, %s90
    %s108 = sphi 0, %s108
    %s110 = sphi 0, %s108
    %s111 = sphi 0, %s110
    %s125 = sphi 0, %s111
    %s131 = sphi 0, %s133
    %s134 = sphi 0, %s131
    %s135 = sphi 0, %s134
    %s151 = sphi 0, %s135
  $region4: #{basic_block_forward.1} parent=0 // loop_header_branch
    %14 = sbr.rel (%p12) target = $region8
  $region5: #{basic_block_forward.1} parent=0 // loop_body
    %s16 = ssub.s32 %s11, 1
    %s17 = ssub.s32 %s11, 2
    %s18 = sadd.s32 %s11, 1
    %s19 = ssub.s32 %s11, %s18
    %p20 = scmp.eq.s32.totalorder %s19, 0
    %s22 = sadd.s32 %s21, 1
    %s23 = scalar_select %p20, %s21, %s22
    %p26 = pneg %p20
    %p27 = scmp.eq.s32.totalorder %s11, 1
    %p28 = por %p26, %p27
    %p29 = scmp.ne.s32.totalorder %s21, %s24
    %p30 = scmp.eq.s32.totalorder %s11, 0
    %p31 = por %p29, %p30
    %p32 = scmp.ne.s32.totalorder %s21, %s24
    %p33 = scmp.eq.s32.totalorder %s16, 1
    %p34 = por %p32, %p33
    %p35 = scmp.ne.s32.totalorder %s24, %s25
    %p36 = scmp.eq.s32.totalorder %s16, 0
    %p37 = por %p35, %p36
    %p38 = scmp.ne.s32.totalorder %s24, %s25
    %p39 = scmp.eq.s32.totalorder %s17, 1
    %p40 = por %p38, %p39
    %p42 = scmp.ne.s32.totalorder %s25, %s41
    %p43 = scmp.eq.s32.totalorder %s17, 0
    %p44 = por %p42, %p43
    %s46 = sadd.s32 %s45, 1
    %p49 = scmp.eq.s32.totalorder %s11, 1
    %p50 = scmp.ne.s32.totalorder %s45, %s47
    %p51 = scmp.eq.s32.totalorder %s11, 0
    %p52 = por %p50, %p51
    %p53 = scmp.ne.s32.totalorder %s45, %s47
    %p54 = scmp.eq.s32.totalorder %s16, 1
    %p55 = por %p53, %p54
    %p56 = scmp.ne.s32.totalorder %s47, %s48
    %p57 = scmp.eq.s32.totalorder %s16, 0
    %p58 = por %p56, %p57
    %p59 = scmp.ne.s32.totalorder %s47, %s48
    %p60 = scmp.eq.s32.totalorder %s17, 1
    %p61 = por %p59, %p60
    %p63 = scmp.ne.s32.totalorder %s48, %s62
    %p64 = scmp.eq.s32.totalorder %s17, 0
    %p65 = por %p63, %p64
    %s67 = sadd.s32 %s66, 1
    %p70 = scmp.eq.s32.totalorder %s11, 1
    %p71 = scmp.ne.s32.totalorder %s66, %s68
    %p72 = scmp.eq.s32.totalorder %s11, 0
    %p73 = por %p71, %p72
    %p74 = scmp.ne.s32.totalorder %s66, %s68
    %p75 = scmp.eq.s32.totalorder %s16, 1
    %p76 = por %p74, %p75
    %p77 = scmp.ne.s32.totalorder %s68, %s69
    %p78 = scmp.eq.s32.totalorder %s16, 0
    %p79 = por %p77, %p78
    %p80 = scmp.ne.s32.totalorder %s68, %s69
    %p81 = scmp.eq.s32.totalorder %s17, 1
    %p82 = por %p80, %p81
    %p84 = scmp.ne.s32.totalorder %s69, %s83
    %p85 = scmp.eq.s32.totalorder %s17, 0
    %p86 = por %p84, %p85
    %s88 = sadd.s32 %s87, 1
    %p91 = scmp.eq.s32.totalorder %s11, 1
    %p92 = scmp.ne.s32.totalorder %s87, %s89
    %p93 = scmp.eq.s32.totalorder %s11, 0
    %p94 = por %p92, %p93
    %p95 = scmp.ne.s32.totalorder %s87, %s89
    %p96 = scmp.eq.s32.totalorder %s16, 1
    %p97 = por %p95, %p96
    %p98 = scmp.ne.s32.totalorder %s89, %s90
    %p99 = scmp.eq.s32.totalorder %s16, 0
    %p100 = por %p98, %p99
    %p101 = scmp.ne.s32.totalorder %s89, %s90
    %p102 = scmp.eq.s32.totalorder %s17, 1
    %p103 = por %p101, %p102
    %p105 = scmp.ne.s32.totalorder %s90, %s104
    %p106 = scmp.eq.s32.totalorder %s17, 0
    %p107 = por %p105, %p106
    %s109 = sadd.s32 %s108, 1
    %p112 = scmp.eq.s32.totalorder %s11, 1
    %p113 = scmp.ne.s32.totalorder %s108, %s110
    %p114 = scmp.eq.s32.totalorder %s11, 0
    %p115 = por %p113, %p114
    %p116 = scmp.ne.s32.totalorder %s108, %s110
    %p117 = scmp.eq.s32.totalorder %s16, 1
    %p118 = por %p116, %p117
    %p119 = scmp.ne.s32.totalorder %s110, %s111
    %p120 = scmp.eq.s32.totalorder %s16, 0
    %p121 = por %p119, %p120
    %p122 = scmp.ne.s32.totalorder %s110, %s111
    %p123 = scmp.eq.s32.totalorder %s17, 1
    %p124 = por %p122, %p123
    %p126 = scmp.ne.s32.totalorder %s111, %s125
    %p127 = scmp.eq.s32.totalorder %s17, 0
    %p128 = por %p126, %p127
    %s129 = ssub.s32 %s11, %s18
    %p130 = scmp.eq.s32.totalorder %s129, 0
    %s132 = sadd.s32 %s131, 1
    %s133 = scalar_select %p130, %s131, %s132
    %p136 = pneg %p130
    %p137 = scmp.eq.s32.totalorder %s11, 1
    %p138 = por %p136, %p137
    %p139 = scmp.ne.s32.totalorder %s131, %s134
    %p140 = scmp.eq.s32.totalorder %s11, 0
    %p141 = por %p139, %p140
    %p142 = scmp.ne.s32.totalorder %s131, %s134
    %p143 = scmp.eq.s32.totalorder %s16, 1
    %p144 = por %p142, %p143
    %p145 = scmp.ne.s32.totalorder %s134, %s135
    %p146 = scmp.eq.s32.totalorder %s16, 0
    %p147 = por %p145, %p146
    %p148 = scmp.ne.s32.totalorder %s134, %s135
    %p149 = scmp.eq.s32.totalorder %s17, 1
    %p150 = por %p148, %p149
    %p152 = scmp.ne.s32.totalorder %s135, %s151
    %p153 = scmp.eq.s32.totalorder %s17, 0
    %p154 = por %p152, %p153
    %p155 = scmp.le.s32.totalorder 1, %s11
    %p156 = scmp.lt.s32.totalorder %s11, 3
    %p157 = pnand %p155, %p156
    %p158 = pneg %p157
    // Predicated region
    $region9: #{basic_block_forward.1} parent=5 // pred_check
      _
    $region10: #{basic_block_forward.1} parent=5 // pred_check_branch
      %160 = sbr.rel (%p157) target = $region12
    $region11: #{basic_block_forward.1} parent=5 // pred_region
      %s161 = ssub.s32 %s11, 1
      // Predicated region
      $region13: #{basic_block_forward.1} parent=11 // pred_check
        %p162 = pneg %p58
      $region14: #{basic_block_forward.1} parent=11 // pred_check_branch
        %164 = sbr.rel (%p162) target = $region16
      $region15: #{basic_block_forward.1} parent=11 // pred_region
        _
      $region16: #{basic_block_forward.1} parent=11 // pred_fallthru
        _
      // Predicated region
      $region17: #{basic_block_forward.1} parent=11 // pred_check
        %p165 = pneg %p79
      $region18: #{basic_block_forward.1} parent=11 // pred_check_branch
        %167 = sbr.rel (%p165) target = $region20
      $region19: #{basic_block_forward.1} parent=11 // pred_region
        _
      $region20: #{basic_block_forward.1} parent=11 // pred_fallthru
        _
      // Predicated region
      $region21: #{basic_block_forward.1} parent=11 // pred_check
        %p168 = pneg %p100
      $region22: #{basic_block_forward.1} parent=11 // pred_check_branch
        %170 = sbr.rel (%p168) target = $region24
      $region23: #{basic_block_forward.1} parent=11 // pred_region
        _
      $region24: #{basic_block_forward.1} parent=11 // pred_fallthru
        _
      // Predicated region
      $region25: #{basic_block_forward.1} parent=11 // pred_check
        %p171 = pneg %p121
      $region26: #{basic_block_forward.1} parent=11 // pred_check_branch
        %173 = sbr.rel (%p171) target = $region28
      $region27: #{basic_block_forward.1} parent=11 // pred_region
        _
      $region28: #{basic_block_forward.1} parent=11 // pred_fallthru
        _
    $region12: #{basic_block_forward.1} parent=5 // pred_fallthru
      _
    %p174 = scmp.lt.s32.totalorder %s11, 2
    // Predicated region
    $region29: #{basic_block_forward.1} parent=5 // pred_check
      %p175 = pneg %p174
    $region30: #{basic_block_forward.1} parent=5 // pred_check_branch
      %177 = sbr.rel (%p175) target = $region32
    $region31: #{basic_block_forward.1} parent=5 // pred_region
      // Predicated region
      $region33: #{basic_block_forward.1} parent=31 // pred_check
        %p178 = pneg %p31
      $region34: #{basic_block_forward.1} parent=31 // pred_check_branch
        %180 = sbr.rel (%p178) target = $region36
      $region35: #{basic_block_forward.1} parent=31 // pred_region
        %p181 = scmp.lt.s32.totalorder %s11, 1
        %s182 = scalar_select %p181, %s11, 1
        %s183 = smul.addr %s182, 8
        %s184 = smul.addr %s183, 8
        %s185 = scalar_lea.vmem %s0, %s184
      $region36: #{basic_block_forward.1} parent=31 // pred_fallthru
        _
    $region32: #{basic_block_forward.1} parent=5 // pred_fallthru
      _
    %p186 = scmp.le.s32.totalorder 1, %s11
    %p187 = scmp.lt.s32.totalorder %s11, 3
    %p188 = pnand %p186, %p187
    %p189 = pneg %p188
    // Predicated region
    $region37: #{basic_block_forward.1} parent=5 // pred_check
      _
    $region38: #{basic_block_forward.1} parent=5 // pred_check_branch
      %191 = sbr.rel (%p188) target = $region40
    $region39: #{basic_block_forward.1} parent=5 // pred_region
      %s192 = ssub.s32 %s11, 1
      %p193 = scmp.lt.s32.totalorder %s16, 1
      %s194 = scalar_select %p193, %s16, 1
      %s195 = smul.addr %s194, 8
      %s196 = smul.addr %s195, 8
      %s197 = scalar_lea.vmem %s0, %s196
      %p198 = pneg %p37
      %p199 = pneg %p34
      %p200 = pneg %p58
      %p201 = pneg %p55
      %p202 = pneg %p79
      %p203 = pneg %p76
      %p204 = pneg %p100
      %p205 = pneg %p97
      %p206 = pneg %p121
      %p207 = pneg %p118
      %p208 = pneg %p147
      %p209 = pneg %p144
      %p210 = scmp.lt.s32.totalorder %s16, 1
      %s211 = scalar_select %p210, %s16, 1
      %s212 = smul.addr %s211, 8
      %s213 = smul.addr %s212, 8
      %s214 = scalar_lea.vmem %s5, %s213
      %p215 = scmp.lt.s32.totalorder %s16, 1
      %s216 = scalar_select %p215, %s16, 1
      %s217 = smul.addr %s216, 8
      %s218 = smul.addr %s217, 8
      %s219 = scalar_lea.vmem %s0, %s218
      %p220 = scmp.lt.s32.totalorder %s16, 1
      %s221 = scalar_select %p220, %s16, 1
      %s222 = smul.addr %s221, 8
      %s223 = smul.addr %s222, 8
      %s224 = scalar_lea.vmem %s5, %s223
      %v226 = vlaneseq
      %v227 = vand.u32 %v226, 127
      %v228 = vadd.s32 %v227, 128
      %vm229 = vcmp.lt.s32.totalorder %v227, 0
      %v230 = vsub.s32 0, %v227
      %v231 = vsel %vm229, %v230, %v227
      %v232 = vshrl.u32 %v231, 4
      %v233 = vand.u32 %v231, 15
      %v234 = vsub.s32 0, %v233
      %v235 = vsel %vm229, %v234, %v233
      %vm236 = vcmp.lt.s32.totalorder %v228, 0
      %v237 = vsub.s32 0, %v228
      %v238 = vsel %vm236, %v237, %v228
      %v239 = vshrl.u32 %v238, 4
      %v240 = vand.u32 %v238, 15
      %v241 = vsub.s32 0, %v240
      %v242 = vsel %vm236, %v241, %v240
      %vm243 = vcmp.ne.s32.totalorder %v235, 0
      %vm244 = vcmp.ne.s32.totalorder %v242, 0
      %vm245 = vcmp.lt.s32.totalorder %v235, 0
      %vm246 = vcmp.lt.s32.totalorder %v242, 0
      %vm247 = vmand %vm245, %vm243
      %vm248 = vmand %vm246, %vm244
      %v249 = vadd.s32 %v235, 16
      %v250 = vadd.s32 %v242, 16
      %v251 = vsel %vm247, %v249, %v235
      %v252 = vsel %vm248, %v250, %v242
      %vm253 = vcmp.ge.s32.totalorder %v251, 1
      %vm254 = vcmp.ge.s32.totalorder %v252, 1
      %vm255 = vcmp.lt.s32.totalorder %v251, 15
      %vm256 = vcmp.lt.s32.totalorder %v252, 15
      %257 = vst [vmem:[#allocation2] sm:$0xff] 0.0
      %258 = vst [vmem:[#allocation2 + $0x20] sm:$0xff] 0.0
      %259 = vst [vmem:[#allocation2 + $0x40] sm:$0xff] 0.0
      %260 = vst [vmem:[#allocation2 + $0x60] sm:$0xff] 0.0
      %261 = vst [vmem:[#allocation2 + $0x18] sm:$0xff] 0.0
      %262 = vst [vmem:[#allocation2 + $0x38] sm:$0xff] 0.0
      %263 = vst [vmem:[#allocation2 + $0x58] sm:$0xff] 0.0
      %264 = vst [vmem:[#allocation2 + $0x78] sm:$0xff] 0.0
      %v265 = vld [vmem:[%s219] sm:$0xff]
      %v266 = vld [vmem:[%s219 + $0x8] sm:$0xff]
      %v267 = vld [vmem:[%s219 + $0x10] sm:$0xff]
      %v268 = vld [vmem:[%s219 + $0x18] sm:$0xff]
      %v269 = vld [vmem:[%s219 + $0x20] sm:$0xff]
      %v270 = vld [vmem:[%s219 + $0x28] sm:$0xff]
      %v271 = vld [vmem:[%s219 + $0x30] sm:$0xff]
      %v272 = vld [vmem:[%s219 + $0x38] sm:$0xff]
      %273 = vst [vmem:[#allocation2 + $0x8] sm:$0xff] %v265
      %274 = vst [vmem:[#allocation2 + $0x10] sm:$0xff] %v266
      %275 = vst [vmem:[#allocation2 + $0x28] sm:$0xff] %v267
      %276 = vst [vmem:[#allocation2 + $0x30] sm:$0xff] %v268
      %277 = vst [vmem:[#allocation2 + $0x48] sm:$0xff] %v269
      %278 = vst [vmem:[#allocation2 + $0x50] sm:$0xff] %v270
      %279 = vst [vmem:[#allocation2 + $0x68] sm:$0xff] %v271
      %280 = vst [vmem:[#allocation2 + $0x70] sm:$0xff] %v272
      %v281 = vld [vmem:[#allocation2] sm:$0xff]
      %v282 = vld [vmem:[#allocation2 + $0x8] sm:$0xff]
      %v283 = vld [vmem:[#allocation2 + $0x10] sm:$0xff]
      %v284 = vld [vmem:[#allocation2 + $0x20] sm:$0xff]
      %v285 = vld [vmem:[#allocation2 + $0x28] sm:$0xff]
      %v286 = vld [vmem:[#allocation2 + $0x30] sm:$0xff]
      %v287 = vld [vmem:[#allocation2 + $0x40] sm:$0xff]
      %v288 = vld [vmem:[#allocation2 + $0x48] sm:$0xff]
      %v289 = vld [vmem:[#allocation2 + $0x50] sm:$0xff]
      %v290 = vld [vmem:[#allocation2 + $0x60] sm:$0xff]
      %v291 = vld [vmem:[#allocation2 + $0x68] sm:$0xff]
      %v292 = vld [vmem:[#allocation2 + $0x70] sm:$0xff]
      %v293 = vsel %vm253, 1, 0
      %v294 = vsel %vm254, 1, 0
      %vm295 = vcmp.eq.s32.totalorder %v293, 1
      %vm296 = vcmp.eq.s32.totalorder %v294, 1
      %309 = vrot.lane.b32.xlu0 %v281, 17
      %v310 = vpop.permute.xlu0 %309
      %311 = vrot.lane.b32.xlu0 %v282, 17
      %v312 = vpop.permute.xlu0 %311
      %313 = vrot.lane.b32.xlu0 %v283, 17
      %v314 = vpop.permute.xlu0 %313
      %315 = vrot.lane.b32.xlu0 %v284, 17
      %v316 = vpop.permute.xlu0 %315
      %317 = vrot.lane.b32.xlu0 %v285, 17
      %v318 = vpop.permute.xlu0 %317
      %319 = vrot.lane.b32.xlu0 %v286, 17
      %v320 = vpop.permute.xlu0 %319
      %321 = vrot.lane.b32.xlu0 %v287, 17
      %v322 = vpop.permute.xlu0 %321
      %323 = vrot.lane.b32.xlu0 %v288, 17
      %v324 = vpop.permute.xlu0 %323
      %325 = vrot.lane.b32.xlu0 %v289, 17
      %v326 = vpop.permute.xlu0 %325
      %327 = vrot.lane.b32.xlu0 %v290, 17
      %v328 = vpop.permute.xlu0 %327
      %329 = vrot.lane.b32.xlu0 %v291, 17
      %v330 = vpop.permute.xlu0 %329
      %331 = vrot.lane.b32.xlu0 %v292, 17
      %v332 = vpop.permute.xlu0 %331
      %vm333 = vcmask 138240
      %v334 = vsel %vm333, %v310, %v312
      %v335 = vsel %vm333, %v312, %v314
      %v336 = vsel %vm333, %v316, %v318
      %v337 = vsel %vm333, %v318, %v320
      %v338 = vsel %vm333, %v322, %v324
      %v339 = vsel %vm333, %v324, %v326
      %v340 = vsel %vm333, %v328, %v330
      %v341 = vsel %vm333, %v330, %v332
      %v350 = vsel %vm295, %v334, 0.0
      %v351 = vsel %vm296, %v335, 0.0
      %v352 = vsel %vm295, %v336, 0.0
      %v353 = vsel %vm296, %v337, 0.0
      %v354 = vsel %vm295, %v338, 0.0
      %v355 = vsel %vm296, %v339, 0.0
      %v356 = vsel %vm295, %v340, 0.0
      %v357 = vsel %vm296, %v341, 0.0
      %v358 = vpack.c.bf16 %v352, %v350
      %v359 = vpack.c.bf16 %v353, %v351
      %v360 = vpack.c.bf16 %v356, %v354
      %v361 = vpack.c.bf16 %v357, %v355
      %362 = vst [vmem:[#allocation3] sm:$0xff] %v358
      %363 = vst [vmem:[#allocation3 + $0x8] sm:$0xff] %v359
      %364 = vst [vmem:[#allocation3 + $0x10] sm:$0xff] %v360
      %365 = vst [vmem:[#allocation3 + $0x18] sm:$0xff] %v361
      %v366 = vld [vmem:[#allocation2] sm:$0xff]
      %v367 = vld [vmem:[#allocation2 + $0x8] sm:$0xff]
      %v368 = vld [vmem:[#allocation2 + $0x10] sm:$0xff]
      %v369 = vld [vmem:[#allocation2 + $0x20] sm:$0xff]
      %v370 = vld [vmem:[#allocation2 + $0x28] sm:$0xff]
      %v371 = vld [vmem:[#allocation2 + $0x30] sm:$0xff]
      %v372 = vld [vmem:[#allocation2 + $0x40] sm:$0xff]
      %v373 = vld [vmem:[#allocation2 + $0x48] sm:$0xff]
      %v374 = vld [vmem:[#allocation2 + $0x50] sm:$0xff]
      %v375 = vld [vmem:[#allocation2 + $0x60] sm:$0xff]
      %v376 = vld [vmem:[#allocation2 + $0x68] sm:$0xff]
      %v377 = vld [vmem:[#allocation2 + $0x70] sm:$0xff]
      %v378 = vpack.c.bf16 %v369, %v366
      %v379 = vpack.c.bf16 %v370, %v367
      %v380 = vpack.c.bf16 %v371, %v368
      %v381 = vpack.c.bf16 %v375, %v372
      %v382 = vpack.c.bf16 %v376, %v373
      %v383 = vpack.c.bf16 %v377, %v374
      %390 = vrot.lane.b32.xlu0 %v378, 16
      %v391 = vpop.permute.xlu0 %390
      %392 = vrot.lane.b32.xlu0 %v379, 16
      %v393 = vpop.permute.xlu0 %392
      %394 = vrot.lane.b32.xlu0 %v380, 16
      %v395 = vpop.permute.xlu0 %394
      %396 = vrot.lane.b32.xlu0 %v381, 16
      %v397 = vpop.permute.xlu0 %396
      %398 = vrot.lane.b32.xlu0 %v382, 16
      %v399 = vpop.permute.xlu0 %398
      %400 = vrot.lane.b32.xlu0 %v383, 16
      %v401 = vpop.permute.xlu0 %400
      %vm402 = vcmask 130048
      %v403 = vsel %vm402, %v391, %v393
      %v404 = vsel %vm402, %v393, %v395
      %v405 = vsel %vm402, %v397, %v399
      %v406 = vsel %vm402, %v399, %v401
      %411 = vst [vmem:[#allocation3 + $0x20] sm:$0xff] %v403
      %412 = vst [vmem:[#allocation3 + $0x28] sm:$0xff] %v404
      %413 = vst [vmem:[#allocation3 + $0x30] sm:$0xff] %v405
      %414 = vst [vmem:[#allocation3 + $0x38] sm:$0xff] %v406
      %v415 = vld [vmem:[#allocation2] sm:$0xff]
      %v416 = vld [vmem:[#allocation2 + $0x8] sm:$0xff]
      %v417 = vld [vmem:[#allocation2 + $0x10] sm:$0xff]
      %v418 = vld [vmem:[#allocation2 + $0x20] sm:$0xff]
      %v419 = vld [vmem:[#allocation2 + $0x28] sm:$0xff]
      %v420 = vld [vmem:[#allocation2 + $0x30] sm:$0xff]
      %v421 = vld [vmem:[#allocation2 + $0x40] sm:$0xff]
      %v422 = vld [vmem:[#allocation2 + $0x48] sm:$0xff]
      %v423 = vld [vmem:[#allocation2 + $0x50] sm:$0xff]
      %v424 = vld [vmem:[#allocation2 + $0x60] sm:$0xff]
      %v425 = vld [vmem:[#allocation2 + $0x68] sm:$0xff]
      %v426 = vld [vmem:[#allocation2 + $0x70] sm:$0xff]
      %v427 = vsel %vm255, 1, 0
      %v428 = vsel %vm256, 1, 0
      %vm429 = vcmp.eq.s32.totalorder %v427, 1
      %vm430 = vcmp.eq.s32.totalorder %v428, 1
      %443 = vrot.lane.b32.xlu0 %v415, 15
      %v444 = vpop.permute.xlu0 %443
      %445 = vrot.lane.b32.xlu0 %v416, 15
      %v446 = vpop.permute.xlu0 %445
      %447 = vrot.lane.b32.xlu0 %v417, 15
      %v448 = vpop.permute.xlu0 %447
      %449 = vrot.lane.b32.xlu0 %v418, 15
      %v450 = vpop.permute.xlu0 %449
      %451 = vrot.lane.b32.xlu0 %v419, 15
      %v452 = vpop.permute.xlu0 %451
      %453 = vrot.lane.b32.xlu0 %v420, 15
      %v454 = vpop.permute.xlu0 %453
      %455 = vrot.lane.b32.xlu0 %v421, 15
      %v456 = vpop.permute.xlu0 %455
      %457 = vrot.lane.b32.xlu0 %v422, 15
      %v458 = vpop.permute.xlu0 %457
      %459 = vrot.lane.b32.xlu0 %v423, 15
      %v460 = vpop.permute.xlu0 %459
      %461 = vrot.lane.b32.xlu0 %v424, 15
      %v462 = vpop.permute.xlu0 %461
      %463 = vrot.lane.b32.xlu0 %v425, 15
      %v464 = vpop.permute.xlu0 %463
      %465 = vrot.lane.b32.xlu0 %v426, 15
      %v466 = vpop.permute.xlu0 %465
      %vm467 = vcmask 121856
      %v468 = vsel %vm467, %v444, %v446
      %v469 = vsel %vm467, %v446, %v448
      %v470 = vsel %vm467, %v450, %v452
      %v471 = vsel %vm467, %v452, %v454
      %v472 = vsel %vm467, %v456, %v458
      %v473 = vsel %vm467, %v458, %v460
      %v474 = vsel %vm467, %v462, %v464
      %v475 = vsel %vm467, %v464, %v466
      %v484 = vsel %vm429, %v468, 0.0
      %v485 = vsel %vm430, %v469, 0.0
      %v486 = vsel %vm429, %v470, 0.0
      %v487 = vsel %vm430, %v471, 0.0
      %v488 = vsel %vm429, %v472, 0.0
      %v489 = vsel %vm430, %v473, 0.0
      %v490 = vsel %vm429, %v474, 0.0
      %v491 = vsel %vm430, %v475, 0.0
      %v492 = vpack.c.bf16 %v486, %v484
      %v493 = vpack.c.bf16 %v487, %v485
      %v494 = vpack.c.bf16 %v490, %v488
      %v495 = vpack.c.bf16 %v491, %v489
      %496 = vst [vmem:[#allocation3 + $0x40] sm:$0xff] %v492
      %497 = vst [vmem:[#allocation3 + $0x48] sm:$0xff] %v493
      %498 = vst [vmem:[#allocation3 + $0x50] sm:$0xff] %v494
      %499 = vst [vmem:[#allocation3 + $0x58] sm:$0xff] %v495
      %v500 = vld [vmem:[#allocation2] sm:$0xff]
      %v501 = vld [vmem:[#allocation2 + $0x8] sm:$0xff]
      %v502 = vld [vmem:[#allocation2 + $0x10] sm:$0xff]
      %v503 = vld [vmem:[#allocation2 + $0x20] sm:$0xff]
      %v504 = vld [vmem:[#allocation2 + $0x28] sm:$0xff]
      %v505 = vld [vmem:[#allocation2 + $0x30] sm:$0xff]
      %v506 = vld [vmem:[#allocation2 + $0x40] sm:$0xff]
      %v507 = vld [vmem:[#allocation2 + $0x48] sm:$0xff]
      %v508 = vld [vmem:[#allocation2 + $0x50] sm:$0xff]
      %v509 = vld [vmem:[#allocation2 + $0x60] sm:$0xff]
      %v510 = vld [vmem:[#allocation2 + $0x68] sm:$0xff]
      %v511 = vld [vmem:[#allocation2 + $0x70] sm:$0xff]
      %524 = vrot.lane.b32.xlu0 %v500, 1
      %v525 = vpop.permute.xlu0 %524
      %526 = vrot.lane.b32.xlu0 %v501, 1
      %v527 = vpop.permute.xlu0 %526
      %528 = vrot.lane.b32.xlu0 %v502, 1
      %v529 = vpop.permute.xlu0 %528
      %530 = vrot.lane.b32.xlu0 %v503, 1
      %v531 = vpop.permute.xlu0 %530
      %532 = vrot.lane.b32.xlu0 %v504, 1
      %v533 = vpop.permute.xlu0 %532
      %534 = vrot.lane.b32.xlu0 %v505, 1
      %v535 = vpop.permute.xlu0 %534
      %536 = vrot.lane.b32.xlu0 %v506, 1
      %v537 = vpop.permute.xlu0 %536
      %538 = vrot.lane.b32.xlu0 %v507, 1
      %v539 = vpop.permute.xlu0 %538
      %540 = vrot.lane.b32.xlu0 %v508, 1
      %v541 = vpop.permute.xlu0 %540
      %542 = vrot.lane.b32.xlu0 %v509, 1
      %v543 = vpop.permute.xlu0 %542
      %544 = vrot.lane.b32.xlu0 %v510, 1
      %v545 = vpop.permute.xlu0 %544
      %546 = vrot.lane.b32.xlu0 %v511, 1
      %v547 = vpop.permute.xlu0 %546
      %vm548 = vcmask 7168
      %v549 = vsel %vm548, %v525, %v527
      %v550 = vsel %vm548, %v527, %v529
      %v551 = vsel %vm548, %v531, %v533
      %v552 = vsel %vm548, %v533, %v535
      %v553 = vsel %vm548, %v537, %v539
      %v554 = vsel %vm548, %v539, %v541
      %v555 = vsel %vm548, %v543, %v545
      %v556 = vsel %vm548, %v545, %v547
      %v565 = vsel %vm295, %v549, 0.0
      %v566 = vsel %vm296, %v550, 0.0
      %v567 = vsel %vm295, %v551, 0.0
      %v568 = vsel %vm296, %v552, 0.0
      %v569 = vsel %vm295, %v553, 0.0
      %v570 = vsel %vm296, %v554, 0.0
      %v571 = vsel %vm295, %v555, 0.0
      %v572 = vsel %vm296, %v556, 0.0
      %v573 = vpack.c.bf16 %v567, %v565
      %v574 = vpack.c.bf16 %v568, %v566
      %v575 = vpack.c.bf16 %v571, %v569
      %v576 = vpack.c.bf16 %v572, %v570
      %577 = vst [vmem:[#allocation3 + $0x60] sm:$0xff] %v573
      %578 = vst [vmem:[#allocation3 + $0x68] sm:$0xff] %v574
      %579 = vst [vmem:[#allocation3 + $0x70] sm:$0xff] %v575
      %580 = vst [vmem:[#allocation3 + $0x78] sm:$0xff] %v576
      %v581 = vld [vmem:[#allocation2 + $0x8] sm:$0xff]
      %v582 = vld [vmem:[#allocation2 + $0x10] sm:$0xff]
      %v583 = vld [vmem:[#allocation2 + $0x28] sm:$0xff]
      %v584 = vld [vmem:[#allocation2 + $0x30] sm:$0xff]
      %v585 = vld [vmem:[#allocation2 + $0x48] sm:$0xff]
      %v586 = vld [vmem:[#allocation2 + $0x50] sm:$0xff]
      %v587 = vld [vmem:[#allocation2 + $0x68] sm:$0xff]
      %v588 = vld [vmem:[#allocation2 + $0x70] sm:$0xff]
      %v589 = vpack.c.bf16 %v583, %v581
      %v590 = vpack.c.bf16 %v584, %v582
      %v591 = vpack.c.bf16 %v587, %v585
      %v592 = vpack.c.bf16 %v588, %v586
      %593 = vst [vmem:[#allocation3 + $0x80] sm:$0xff] %v589
      %594 = vst [vmem:[#allocation3 + $0x88] sm:$0xff] %v590
      %595 = vst [vmem:[#allocation3 + $0x90] sm:$0xff] %v591
      %596 = vst [vmem:[#allocation3 + $0x98] sm:$0xff] %v592
      %v597 = vld [vmem:[#allocation2 + $0x8] sm:$0xff]
      %v598 = vld [vmem:[#allocation2 + $0x10] sm:$0xff]
      %v599 = vld [vmem:[#allocation2 + $0x18] sm:$0xff]
      %v600 = vld [vmem:[#allocation2 + $0x28] sm:$0xff]
      %v601 = vld [vmem:[#allocation2 + $0x30] sm:$0xff]
      %v602 = vld [vmem:[#allocation2 + $0x38] sm:$0xff]
      %v603 = vld [vmem:[#allocation2 + $0x48] sm:$0xff]
      %v604 = vld [vmem:[#allocation2 + $0x50] sm:$0xff]
      %v605 = vld [vmem:[#allocation2 + $0x58] sm:$0xff]
      %v606 = vld [vmem:[#allocation2 + $0x68] sm:$0xff]
      %v607 = vld [vmem:[#allocation2 + $0x70] sm:$0xff]
      %v608 = vld [vmem:[#allocation2 + $0x78] sm:$0xff]
      %621 = vrot.lane.b32.xlu0 %v597, 127
      %v622 = vpop.permute.xlu0 %621
      %623 = vrot.lane.b32.xlu0 %v598, 127
      %v624 = vpop.permute.xlu0 %623
      %625 = vrot.lane.b32.xlu0 %v599, 127
      %v626 = vpop.permute.xlu0 %625
      %627 = vrot.lane.b32.xlu0 %v600, 127
      %v628 = vpop.permute.xlu0 %627
      %629 = vrot.lane.b32.xlu0 %v601, 127
      %v630 = vpop.permute.xlu0 %629
      %631 = vrot.lane.b32.xlu0 %v602, 127
      %v632 = vpop.permute.xlu0 %631
      %633 = vrot.lane.b32.xlu0 %v603, 127
      %v634 = vpop.permute.xlu0 %633
      %635 = vrot.lane.b32.xlu0 %v604, 127
      %v636 = vpop.permute.xlu0 %635
      %637 = vrot.lane.b32.xlu0 %v605, 127
      %v638 = vpop.permute.xlu0 %637
      %639 = vrot.lane.b32.xlu0 %v606, 127
      %v640 = vpop.permute.xlu0 %639
      %641 = vrot.lane.b32.xlu0 %v607, 127
      %v642 = vpop.permute.xlu0 %641
      %643 = vrot.lane.b32.xlu0 %v608, 127
      %v644 = vpop.permute.xlu0 %643
      %vm645 = vcmask 1039360
      %v646 = vsel %vm645, %v622, %v624
      %v647 = vsel %vm645, %v624, %v626
      %v648 = vsel %vm645, %v628, %v630
      %v649 = vsel %vm645, %v630, %v632
      %v650 = vsel %vm645, %v634, %v636
      %v651 = vsel %vm645, %v636, %v638
      %v652 = vsel %vm645, %v640, %v642
      %v653 = vsel %vm645, %v642, %v644
      %v662 = vsel %vm429, %v646, 0.0
      %v663 = vsel %vm430, %v647, 0.0
      %v664 = vsel %vm429, %v648, 0.0
      %v665 = vsel %vm430, %v649, 0.0
      %v666 = vsel %vm429, %v650, 0.0
      %v667 = vsel %vm430, %v651, 0.0
      %v668 = vsel %vm429, %v652, 0.0
      %v669 = vsel %vm430, %v653, 0.0
      %v670 = vpack.c.bf16 %v664, %v662
      %v671 = vpack.c.bf16 %v665, %v663
      %v672 = vpack.c.bf16 %v668, %v666
      %v673 = vpack.c.bf16 %v669, %v667
      %674 = vst [vmem:[#allocation3 + $0xa0] sm:$0xff] %v670
      %675 = vst [vmem:[#allocation3 + $0xa8] sm:$0xff] %v671
      %676 = vst [vmem:[#allocation3 + $0xb0] sm:$0xff] %v672
      %677 = vst [vmem:[#allocation3 + $0xb8] sm:$0xff] %v673
      %v678 = vld [vmem:[#allocation2 + $0x8] sm:$0xff]
      %v679 = vld [vmem:[#allocation2 + $0x10] sm:$0xff]
      %v680 = vld [vmem:[#allocation2 + $0x18] sm:$0xff]
      %v681 = vld [vmem:[#allocation2 + $0x28] sm:$0xff]
      %v682 = vld [vmem:[#allocation2 + $0x30] sm:$0xff]
      %v683 = vld [vmem:[#allocation2 + $0x38] sm:$0xff]
      %v684 = vld [vmem:[#allocation2 + $0x48] sm:$0xff]
      %v685 = vld [vmem:[#allocation2 + $0x50] sm:$0xff]
      %v686 = vld [vmem:[#allocation2 + $0x58] sm:$0xff]
      %v687 = vld [vmem:[#allocation2 + $0x68] sm:$0xff]
      %v688 = vld [vmem:[#allocation2 + $0x70] sm:$0xff]
      %v689 = vld [vmem:[#allocation2 + $0x78] sm:$0xff]
      %702 = vrot.lane.b32.xlu0 %v678, 113
      %v703 = vpop.permute.xlu0 %702
      %704 = vrot.lane.b32.xlu0 %v679, 113
      %v705 = vpop.permute.xlu0 %704
      %706 = vrot.lane.b32.xlu0 %v680, 113
      %v707 = vpop.permute.xlu0 %706
      %708 = vrot.lane.b32.xlu0 %v681, 113
      %v709 = vpop.permute.xlu0 %708
      %710 = vrot.lane.b32.xlu0 %v682, 113
      %v711 = vpop.permute.xlu0 %710
      %712 = vrot.lane.b32.xlu0 %v683, 113
      %v713 = vpop.permute.xlu0 %712
      %714 = vrot.lane.b32.xlu0 %v684, 113
      %v715 = vpop.permute.xlu0 %714
      %716 = vrot.lane.b32.xlu0 %v685, 113
      %v717 = vpop.permute.xlu0 %716
      %718 = vrot.lane.b32.xlu0 %v686, 113
      %v719 = vpop.permute.xlu0 %718
      %720 = vrot.lane.b32.xlu0 %v687, 113
      %v721 = vpop.permute.xlu0 %720
      %722 = vrot.lane.b32.xlu0 %v688, 113
      %v723 = vpop.permute.xlu0 %722
      %724 = vrot.lane.b32.xlu0 %v689, 113
      %v725 = vpop.permute.xlu0 %724
      %vm726 = vcmask 924672
      %v727 = vsel %vm726, %v703, %v705
      %v728 = vsel %vm726, %v705, %v707
      %v729 = vsel %vm726, %v709, %v711
      %v730 = vsel %vm726, %v711, %v713
      %v731 = vsel %vm726, %v715, %v717
      %v732 = vsel %vm726, %v717, %v719
      %v733 = vsel %vm726, %v721, %v723
      %v734 = vsel %vm726, %v723, %v725
      %v743 = vsel %vm295, %v727, 0.0
      %v744 = vsel %vm296, %v728, 0.0
      %v745 = vsel %vm295, %v729, 0.0
      %v746 = vsel %vm296, %v730, 0.0
      %v747 = vsel %vm295, %v731, 0.0
      %v748 = vsel %vm296, %v732, 0.0
      %v749 = vsel %vm295, %v733, 0.0
      %v750 = vsel %vm296, %v734, 0.0
      %v751 = vpack.c.bf16 %v745, %v743
      %v752 = vpack.c.bf16 %v746, %v744
      %v753 = vpack.c.bf16 %v749, %v747
      %v754 = vpack.c.bf16 %v750, %v748
      %755 = vst [vmem:[#allocation3 + $0xc0] sm:$0xff] %v751
      %756 = vst [vmem:[#allocation3 + $0xc8] sm:$0xff] %v752
      %757 = vst [vmem:[#allocation3 + $0xd0] sm:$0xff] %v753
      %758 = vst [vmem:[#allocation3 + $0xd8] sm:$0xff] %v754
      %v759 = vld [vmem:[#allocation2 + $0x8] sm:$0xff]
      %v760 = vld [vmem:[#allocation2 + $0x10] sm:$0xff]
      %v761 = vld [vmem:[#allocation2 + $0x18] sm:$0xff]
      %v762 = vld [vmem:[#allocation2 + $0x28] sm:$0xff]
      %v763 = vld [vmem:[#allocation2 + $0x30] sm:$0xff]
      %v764 = vld [vmem:[#allocation2 + $0x38] sm:$0xff]
      %v765 = vld [vmem:[#allocation2 + $0x48] sm:$0xff]
      %v766 = vld [vmem:[#allocation2 + $0x50] sm:$0xff]
      %v767 = vld [vmem:[#allocation2 + $0x58] sm:$0xff]
      %v768 = vld [vmem:[#allocation2 + $0x68] sm:$0xff]
      %v769 = vld [vmem:[#allocation2 + $0x70] sm:$0xff]
      %v770 = vld [vmem:[#allocation2 + $0x78] sm:$0xff]
      %v771 = vpack.c.bf16 %v762, %v759
      %v772 = vpack.c.bf16 %v763, %v760
      %v773 = vpack.c.bf16 %v764, %v761
      %v774 = vpack.c.bf16 %v768, %v765
      %v775 = vpack.c.bf16 %v769, %v766
      %v776 = vpack.c.bf16 %v770, %v767
      %783 = vrot.lane.b32.xlu0 %v771, 112
      %v784 = vpop.permute.xlu0 %783
      %785 = vrot.lane.b32.xlu0 %v772, 112
      %v786 = vpop.permute.xlu0 %785
      %787 = vrot.lane.b32.xlu0 %v773, 112
      %v788 = vpop.permute.xlu0 %787
      %789 = vrot.lane.b32.xlu0 %v774, 112
      %v790 = vpop.permute.xlu0 %789
      %791 = vrot.lane.b32.xlu0 %v775, 112
      %v792 = vpop.permute.xlu0 %791
      %793 = vrot.lane.b32.xlu0 %v776, 112
      %v794 = vpop.permute.xlu0 %793
      %vm795 = vcmask 916480
      %v796 = vsel %vm795, %v784, %v786
      %v797 = vsel %vm795, %v786, %v788
      %v798 = vsel %vm795, %v790, %v792
      %v799 = vsel %vm795, %v792, %v794
      %804 = vst [vmem:[#allocation3 + $0xe0] sm:$0xff] %v796
      %805 = vst [vmem:[#allocation3 + $0xe8] sm:$0xff] %v797
      %806 = vst [vmem:[#allocation3 + $0xf0] sm:$0xff] %v798
      %807 = vst [vmem:[#allocation3 + $0xf8] sm:$0xff] %v799
      %v808 = vld [vmem:[#allocation2 + $0x8] sm:$0xff]
      %v809 = vld [vmem:[#allocation2 + $0x10] sm:$0xff]
      %v810 = vld [vmem:[#allocation2 + $0x18] sm:$0xff]
      %v811 = vld [vmem:[#allocation2 + $0x28] sm:$0xff]
      %v812 = vld [vmem:[#allocation2 + $0x30] sm:$0xff]
      %v813 = vld [vmem:[#allocation2 + $0x38] sm:$0xff]
      %v814 = vld [vmem:[#allocation2 + $0x48] sm:$0xff]
      %v815 = vld [vmem:[#allocation2 + $0x50] sm:$0xff]
      %v816 = vld [vmem:[#allocation2 + $0x58] sm:$0xff]
      %v817 = vld [vmem:[#allocation2 + $0x68] sm:$0xff]
      %v818 = vld [vmem:[#allocation2 + $0x70] sm:$0xff]
      %v819 = vld [vmem:[#allocation2 + $0x78] sm:$0xff]
      %832 = vrot.lane.b32.xlu0 %v808, 111
      %v833 = vpop.permute.xlu0 %832
      %834 = vrot.lane.b32.xlu0 %v809, 111
      %v835 = vpop.permute.xlu0 %834
      %836 = vrot.lane.b32.xlu0 %v810, 111
      %v837 = vpop.permute.xlu0 %836
      %838 = vrot.lane.b32.xlu0 %v811, 111
      %v839 = vpop.permute.xlu0 %838
      %840 = vrot.lane.b32.xlu0 %v812, 111
      %v841 = vpop.permute.xlu0 %840
      %842 = vrot.lane.b32.xlu0 %v813, 111
      %v843 = vpop.permute.xlu0 %842
      %844 = vrot.lane.b32.xlu0 %v814, 111
      %v845 = vpop.permute.xlu0 %844
      %846 = vrot.lane.b32.xlu0 %v815, 111
      %v847 = vpop.permute.xlu0 %846
      %848 = vrot.lane.b32.xlu0 %v816, 111
      %v849 = vpop.permute.xlu0 %848
      %850 = vrot.lane.b32.xlu0 %v817, 111
      %v851 = vpop.permute.xlu0 %850
      %852 = vrot.lane.b32.xlu0 %v818, 111
      %v853 = vpop.permute.xlu0 %852
      %854 = vrot.lane.b32.xlu0 %v819, 111
      %v855 = vpop.permute.xlu0 %854
      %vm856 = vcmask 908288
      %v857 = vsel %vm856, %v833, %v835
      %v858 = vsel %vm856, %v835, %v837
      %v859 = vsel %vm856, %v839, %v841
      %v860 = vsel %vm856, %v841, %v843
      %v861 = vsel %vm856, %v845, %v847
      %v862 = vsel %vm856, %v847, %v849
      %v863 = vsel %vm856, %v851, %v853
      %v864 = vsel %vm856, %v853, %v855
      %v873 = vsel %vm429, %v857, 0.0
      %v874 = vsel %vm430, %v858, 0.0
      %v875 = vsel %vm429, %v859, 0.0
      %v876 = vsel %vm430, %v860, 0.0
      %v877 = vsel %vm429, %v861, 0.0
      %v878 = vsel %vm430, %v862, 0.0
      %v879 = vsel %vm429, %v863, 0.0
      %v880 = vsel %vm430, %v864, 0.0
      %v881 = vpack.c.bf16 %v875, %v873
      %v882 = vpack.c.bf16 %v876, %v874
      %v883 = vpack.c.bf16 %v879, %v877
      %v884 = vpack.c.bf16 %v880, %v878
      %885 = vst [vmem:[#allocation3 + $0x100] sm:$0xff] %v881
      %886 = vst [vmem:[#allocation3 + $0x108] sm:$0xff] %v882
      %887 = vst [vmem:[#allocation3 + $0x110] sm:$0xff] %v883
      %888 = vst [vmem:[#allocation3 + $0x118] sm:$0xff] %v884
      %v889 = vld [vmem:[%s1] sm:$0xff]
      %v890 = vld [vmem:[%s1 + $0x8] sm:$0xf]
      %v891 = vld [vmem:[%s1 + $0xc] sm:$0xff]
      %v892 = vld [vmem:[%s1 + $0x14] sm:$0xf]
      %v893 = vld [vmem:[%s1 + $0x18] sm:$0xff]
      %v894 = vld [vmem:[%s1 + $0x20] sm:$0xf]
      %v895 = vld [vmem:[%s1 + $0x24] sm:$0xff]
      %v896 = vld [vmem:[%s1 + $0x2c] sm:$0xf]
      %v897 = vld [vmem:[#allocation3] sm:$0xff]
      %v898 = vld [vmem:[#allocation3 + $0x8] sm:$0xff]
      %v899 = vld [vmem:[#allocation3 + $0x10] sm:$0xff]
      %v900 = vld [vmem:[#allocation3 + $0x18] sm:$0xff]
      %v901 = vld [vmem:[#allocation3 + $0x20] sm:$0xff]
      %v902 = vld [vmem:[#allocation3 + $0x28] sm:$0xff]
      %v903 = vld [vmem:[#allocation3 + $0x30] sm:$0xff]
      %v904 = vld [vmem:[#allocation3 + $0x38] sm:$0xff]
      %v905 = vld [vmem:[#allocation3 + $0x40] sm:$0xff]
      %v906 = vld [vmem:[#allocation3 + $0x48] sm:$0xff]
      %v907 = vld [vmem:[#allocation3 + $0x50] sm:$0xff]
      %v908 = vld [vmem:[#allocation3 + $0x58] sm:$0xff]
      %v909 = vld [vmem:[#allocation3 + $0x60] sm:$0xff]
      %v910 = vld [vmem:[#allocation3 + $0x68] sm:$0xff]
      %v911 = vld [vmem:[#allocation3 + $0x70] sm:$0xff]
      %v912 = vld [vmem:[#allocation3 + $0x78] sm:$0xff]
      %v913 = vld [vmem:[#allocation3 + $0x80] sm:$0xff]
      %v914 = vld [vmem:[#allocation3 + $0x88] sm:$0xff]
      %v915 = vld [vmem:[#allocation3 + $0x90] sm:$0xff]
      %v916 = vld [vmem:[#allocation3 + $0x98] sm:$0xff]
      %v917 = vld [vmem:[#allocation3 + $0xa0] sm:$0xff]
      %v918 = vld [vmem:[#allocation3 + $0xa8] sm:$0xff]
      %v919 = vld [vmem:[#allocation3 + $0xb0] sm:$0xff]
      %v920 = vld [vmem:[#allocation3 + $0xb8] sm:$0xff]
      %v921 = vld [vmem:[#allocation3 + $0xc0] sm:$0xff]
      %v922 = vld [vmem:[#allocation3 + $0xc8] sm:$0xff]
      %v923 = vld [vmem:[#allocation3 + $0xd0] sm:$0xff]
      %v924 = vld [vmem:[#allocation3 + $0xd8] sm:$0xff]
      %v925 = vld [vmem:[#allocation3 + $0xe0] sm:$0xff]
      %v926 = vld [vmem:[#allocation3 + $0xe8] sm:$0xff]
      %v927 = vld [vmem:[#allocation3 + $0xf0] sm:$0xff]
      %v928 = vld [vmem:[#allocation3 + $0xf8] sm:$0xff]
      %v929 = vld [vmem:[#allocation3 + $0x100] sm:$0xff]
      %v930 = vld [vmem:[#allocation3 + $0x108] sm:$0xff]
      %v931 = vld [vmem:[#allocation3 + $0x110] sm:$0xff]
      %v932 = vld [vmem:[#allocation3 + $0x118] sm:$0xff]
      %v933 = vld [vmem:[%s2] sm:$0xff]
      %v934 = vld [vmem:[%s2 + $0x8] sm:$0xff]
      %v935 = vld [vmem:[%s2 + $0x10] sm:$0xff]
      %v936 = vld [vmem:[%s2 + $0x18] sm:$0xff]
      %938 = vset.pattern.permute.xlu0 0
      %939 = vperm.xlu0 %938, %v933
      %v940 = vpop.permute.xlu0 %939
      %943 = vset.pattern.permute.xlu0 0
      %944 = vperm.xlu0 %943, %v934
      %v945 = vpop.permute.xlu0 %944
      %948 = vset.pattern.permute.xlu0 0
      %949 = vperm.xlu0 %948, %v935
      %v950 = vpop.permute.xlu0 %949
      %953 = vset.pattern.permute.xlu0 0
      %954 = vperm.xlu0 %953, %v936
      %v955 = vpop.permute.xlu0 %954
      %v965 = vunpack.c.l.b16 %v889
      %v966 = vunpack.c.h.b16 %v889
      %v967 = vunpack.c.l.b16 %v890
      %v968 = vunpack.c.l.b16 %v891
      %v969 = vunpack.c.h.b16 %v891
      %v970 = vunpack.c.l.b16 %v892
      %v971 = vunpack.c.l.b16 %v893
      %v972 = vunpack.c.h.b16 %v893
      %v973 = vunpack.c.l.b16 %v894
      %v974 = vunpack.c.l.b16 %v895
      %v975 = vunpack.c.h.b16 %v895
      %v976 = vunpack.c.l.b16 %v896
      %v977 = vpack.c.b16 %v968, %v965
      %v978 = vpack.c.b16 %v969, %v966
      %v979 = vpack.c.b16 %v970, %v967
      %v980 = vpack.c.b16 %v974, %v971
      %v981 = vpack.c.b16 %v975, %v972
      %v982 = vpack.c.b16 %v976, %v973
      %vm987 = vcmask 261120
      %v989 = vsel %vm987, %v979, 0
      %v992 = vsel %vm987, %v982, 0
      %994 = vmatprep.subr.bf16.mxu0 %v898
      %995 = vmatpush1.bf16.msra.mxu0 %v897
      %996 = vmatprep.subr.bf16.mxu0 %v900
      %997 = vmatpush1.bf16.msra.mxu0 %v899
      %998 = vmatprep.subr.bf16.mxu0 %v902
      %999 = vmatpush1.bf16.msra.mxu0 %v901
      %1000 = vmatprep.subr.bf16.mxu0 %v904
      %1001 = vmatpush1.bf16.msra.mxu0 %v903
      %1002 = vmatprep.subr.bf16.mxu0 %v906
      %1003 = vmatpush1.bf16.msra.mxu0 %v905
      %1004 = vmatprep.subr.bf16.mxu0 %v908
      %1005 = vmatpush1.bf16.msra.mxu0 %v907
      %1006 = vmatprep.subr.bf16.mxu0 %v910
      %1007 = vmatpush1.bf16.msra.mxu0 %v909
      %1008 = vmatprep.subr.bf16.mxu0 %v912
      %1009 = vmatpush1.bf16.msra.mxu0 %v911
      %1010 = vmatprep.subr.bf16.mxu0 %v914
      %1011 = vmatpush1.bf16.msra.mxu0 %v913
      %1012 = vmatprep.subr.bf16.mxu0 %v916
      %1013 = vmatpush1.bf16.msra.mxu0 %v915
      %1014 = vmatprep.subr.bf16.mxu0 %v918
      %1015 = vmatpush1.bf16.msra.mxu0 %v917
      %1016 = vmatprep.subr.bf16.mxu0 %v920
      %1017 = vmatpush1.bf16.msra.mxu0 %v919
      %1018 = vmatprep.subr.bf16.mxu0 %v922
      %1019 = vmatpush1.bf16.msra.mxu0 %v921
      %1020 = vmatprep.subr.bf16.mxu0 %v924
      %1021 = vmatpush1.bf16.msra.mxu0 %v923
      %1022 = vmatprep.subr.bf16.mxu0 %v926
      %1023 = vmatpush1.bf16.msra.mxu0 %v925
      %1024 = vmatprep.subr.bf16.mxu0 %v928
      %1025 = vmatpush1.bf16.msra.mxu0 %v927
      %1026 = vmatprep.mubr.bf16.mxu0 %v978
      %1027 = vmatmul.mubr.bf16.gmra.mrb[0].mxu0 %v977
      %v1028 = vpop.f32.mrb[0].mxu0
      %v1029 = vadd.f32 %v940, %v1028
      %v1030 = vpop.f32.mrb[0].mxu0
      %v1031 = vadd.f32 %v940, %v1030
      %v1032 = vpop.f32.mrb[0].mxu0
      %v1033 = vadd.f32 %v945, %v1032
      %v1034 = vpop.f32.mrb[0].mxu0
      %v1035 = vadd.f32 %v945, %v1034
      %1036 = vmatprep.mubr.bf16.mxu0 %v981
      %1037 = vmatmul.mubr.bf16.gmra.mrb[0].mxu0 %v980
      %v1038 = vpop.f32.mrb[0].mxu0
      %v1039 = vadd.f32 %v950, %v1038
      %v1040 = vpop.f32.mrb[0].mxu0
      %v1041 = vadd.f32 %v950, %v1040
      %v1042 = vpop.f32.mrb[0].mxu0
      %v1043 = vadd.f32 %v955, %v1042
      %v1044 = vpop.f32.mrb[0].mxu0
      %v1045 = vadd.f32 %v955, %v1044
      %1046 = vdwg.mxu0
      %1047 = vmatprep.subr.bf16.mxu0 %v930
      %1048 = vmatpush1.bf16.msra.mxu0 %v929
      %1049 = vmatprep.subr.bf16.mxu0 %v932
      %1050 = vmatpush1.bf16.msra.mxu0 %v931
      %1051 = vmatprep.subr.bf16.mxu0 0
      %1052 = vmatpush1.bf16.msra.mxu0 0
      %1053 = vmatprep.subr.bf16.mxu0 0
      %1054 = vmatpush1.bf16.msra.mxu0 0
      %1055 = vmatprep.subr.bf16.mxu0 0
      %1056 = vmatpush1.bf16.msra.mxu0 0
      %1057 = vmatprep.subr.bf16.mxu0 0
      %1058 = vmatpush1.bf16.msra.mxu0 0
      %1059 = vmatprep.subr.bf16.mxu0 0
      %1060 = vmatpush1.bf16.msra.mxu0 0
      %1061 = vmatprep.subr.bf16.mxu0 0
      %1062 = vmatpush1.bf16.msra.mxu0 0
      %1063 = vmatprep.subr.bf16.mxu0 0
      %1064 = vmatpush1.bf16.msra.mxu0 0
      %1065 = vmatprep.subr.bf16.mxu0 0
      %1066 = vmatpush1.bf16.msra.mxu0 0
      %1067 = vmatprep.subr.bf16.mxu0 0
      %1068 = vmatpush1.bf16.msra.mxu0 0
      %1069 = vmatprep.subr.bf16.mxu0 0
      %1070 = vmatpush1.bf16.msra.mxu0 0
      %1071 = vmatprep.subr.bf16.mxu0 0
      %1072 = vmatpush1.bf16.msra.mxu0 0
      %1073 = vmatprep.subr.bf16.mxu0 0
      %1074 = vmatpush1.bf16.msra.mxu0 0
      %1075 = vmatprep.subr.bf16.mxu0 0
      %1076 = vmatpush1.bf16.msra.mxu0 0
      %1077 = vmatprep.subr.bf16.mxu0 0
      %1078 = vmatpush1.bf16.msra.mxu0 0
      %1079 = vmatprep.mubr.bf16.mxu0 0
      %1080 = vmatmul.mubr.bf16.gmra.mrb[0].mxu0 %v989
      %v1081 = vpop.f32.mrb[0].mxu0
      %v1082 = vadd.f32 %v1029, %v1081
      %v1083 = vpop.f32.mrb[0].mxu0
      %v1084 = vadd.f32 %v1031, %v1083
      %v1085 = vpop.f32.mrb[0].mxu0
      %v1086 = vadd.f32 %v1033, %v1085
      %v1087 = vpop.f32.mrb[0].mxu0
      %v1088 = vadd.f32 %v1035, %v1087
      %1089 = vmatprep.mubr.bf16.mxu0 0
      %1090 = vmatmul.mubr.bf16.gmra.mrb[0].mxu0 %v992
      %v1091 = vpop.f32.mrb[0].mxu0
      %v1092 = vadd.f32 %v1039, %v1091
      %v1093 = vpop.f32.mrb[0].mxu0
      %v1094 = vadd.f32 %v1041, %v1093
      %v1095 = vpop.f32.mrb[0].mxu0
      %v1096 = vadd.f32 %v1043, %v1095
      %v1097 = vpop.f32.mrb[0].mxu0
      %v1098 = vadd.f32 %v1045, %v1097
      %1099 = vdwg.mxu0
      %v1100 = vmax.f32 %v1082, 0.0
      %v1101 = vmax.f32 %v1084, 0.0
      %v1102 = vmax.f32 %v1086, 0.0
      %v1103 = vmax.f32 %v1088, 0.0
      %v1104 = vmax.f32 %v1092, 0.0
      %v1105 = vmax.f32 %v1094, 0.0
      %v1106 = vmax.f32 %v1096, 0.0
      %v1107 = vmax.f32 %v1098, 0.0
      %1108 = vst [vmem:[#allocation2 + $0x8] sm:$0xff] %v1100
      %1109 = vst [vmem:[#allocation2 + $0x10] sm:$0xff] %v1101
      %1110 = vst [vmem:[#allocation2 + $0x28] sm:$0xff] %v1102
      %1111 = vst [vmem:[#allocation2 + $0x30] sm:$0xff] %v1103
      %1112 = vst [vmem:[#allocation2 + $0x48] sm:$0xff] %v1104
      %1113 = vst [vmem:[#allocation2 + $0x50] sm:$0xff] %v1105
      %1114 = vst [vmem:[#allocation2 + $0x68] sm:$0xff] %v1106
      %1115 = vst [vmem:[#allocation2 + $0x70] sm:$0xff] %v1107
      %v1116 = vld [vmem:[%s3] sm:$0xff]
      %v1117 = vld [vmem:[%s3 + $0x8] sm:$0xff]
      %v1118 = vld [vmem:[%s3 + $0x10] sm:$0xff]
      %v1119 = vld [vmem:[%s3 + $0x18] sm:$0xff]
      %v1120 = vld [vmem:[#allocation2] sm:$0xff]
      %v1121 = vld [vmem:[#allocation2 + $0x8] sm:$0xff]
      %v1122 = vld [vmem:[#allocation2 + $0x10] sm:$0xff]
      %v1123 = vld [vmem:[#allocation2 + $0x20] sm:$0xff]
      %v1124 = vld [vmem:[#allocation2 + $0x28] sm:$0xff]
      %v1125 = vld [vmem:[#allocation2 + $0x30] sm:$0xff]
      %v1126 = vld [vmem:[#allocation2 + $0x40] sm:$0xff]
      %v1127 = vld [vmem:[#allocation2 + $0x48] sm:$0xff]
      %v1128 = vld [vmem:[#allocation2 + $0x50] sm:$0xff]
      %v1129 = vld [vmem:[#allocation2 + $0x60] sm:$0xff]
      %v1130 = vld [vmem:[#allocation2 + $0x68] sm:$0xff]
      %v1131 = vld [vmem:[#allocation2 + $0x70] sm:$0xff]
      %1144 = vrot.lane.b32.xlu0 %v1120, 17
      %v1145 = vpop.permute.xlu0 %1144
      %1146 = vrot.lane.b32.xlu0 %v1121, 17
      %v1147 = vpop.permute.xlu0 %1146
      %1148 = vrot.lane.b32.xlu0 %v1122, 17
      %v1149 = vpop.permute.xlu0 %1148
      %1150 = vrot.lane.b32.xlu0 %v1123, 17
      %v1151 = vpop.permute.xlu0 %1150
      %1152 = vrot.lane.b32.xlu0 %v1124, 17
      %v1153 = vpop.permute.xlu0 %1152
      %1154 = vrot.lane.b32.xlu0 %v1125, 17
      %v1155 = vpop.permute.xlu0 %1154
      %1156 = vrot.lane.b32.xlu0 %v1126, 17
      %v1157 = vpop.permute.xlu0 %1156
      %1158 = vrot.lane.b32.xlu0 %v1127, 17
      %v1159 = vpop.permute.xlu0 %1158
      %1160 = vrot.lane.b32.xlu0 %v1128, 17
      %v1161 = vpop.permute.xlu0 %1160
      %1162 = vrot.lane.b32.xlu0 %v1129, 17
      %v1163 = vpop.permute.xlu0 %1162
      %1164 = vrot.lane.b32.xlu0 %v1130, 17
      %v1165 = vpop.permute.xlu0 %1164
      %1166 = vrot.lane.b32.xlu0 %v1131, 17
      %v1167 = vpop.permute.xlu0 %1166
      %v1168 = vsel %vm333, %v1145, %v1147
      %v1169 = vsel %vm333, %v1147, %v1149
      %v1170 = vsel %vm333, %v1151, %v1153
      %v1171 = vsel %vm333, %v1153, %v1155
      %v1172 = vsel %vm333, %v1157, %v1159
      %v1173 = vsel %vm333, %v1159, %v1161
      %v1174 = vsel %vm333, %v1163, %v1165
      %v1175 = vsel %vm333, %v1165, %v1167
      %v1184 = vsel %vm295, %v1168, 0.0
      %v1185 = vsel %vm296, %v1169, 0.0
      %v1186 = vsel %vm295, %v1170, 0.0
      %v1187 = vsel %vm296, %v1171, 0.0
      %v1188 = vsel %vm295, %v1172, 0.0
      %v1189 = vsel %vm296, %v1173, 0.0
      %v1190 = vsel %vm295, %v1174, 0.0
      %v1191 = vsel %vm296, %v1175, 0.0
      %1193 = vset.pattern.permute.xlu0 0
      %1194 = vperm.xlu0 %1193, %v1116
      %v1195 = vpop.permute.xlu0 %1194
      %1198 = vset.pattern.permute.xlu0 0
      %1199 = vperm.xlu0 %1198, %v1117
      %v1200 = vpop.permute.xlu0 %1199
      %1203 = vset.pattern.permute.xlu0 0
      %1204 = vperm.xlu0 %1203, %v1118
      %v1205 = vpop.permute.xlu0 %1204
      %1208 = vset.pattern.permute.xlu0 0
      %1209 = vperm.xlu0 %1208, %v1119
      %v1210 = vpop.permute.xlu0 %1209
      %v1212 = vmul.f32 %v1195, %v1184
      %v1213 = vmul.f32 %v1195, %v1185
      %v1214 = vmul.f32 %v1200, %v1186
      %v1215 = vmul.f32 %v1200, %v1187
      %v1216 = vmul.f32 %v1205, %v1188
      %v1217 = vmul.f32 %v1205, %v1189
      %v1218 = vmul.f32 %v1210, %v1190
      %v1219 = vmul.f32 %v1210, %v1191
      %v1220 = vadd.f32 %v1212, 0.0
      %v1221 = vadd.f32 %v1213, 0.0
      %v1222 = vadd.f32 %v1214, 0.0
      %v1223 = vadd.f32 %v1215, 0.0
      %v1224 = vadd.f32 %v1216, 0.0
      %v1225 = vadd.f32 %v1217, 0.0
      %v1226 = vadd.f32 %v1218, 0.0
      %v1227 = vadd.f32 %v1219, 0.0
      %s1228 = scalar_lea.vmem %s3, 32
      %v1229 = vld [vmem:[%s1228] sm:$0xff]
      %v1230 = vld [vmem:[%s1228 + $0x8] sm:$0xff]
      %v1231 = vld [vmem:[%s1228 + $0x10] sm:$0xff]
      %v1232 = vld [vmem:[%s1228 + $0x18] sm:$0xff]
      %1234 = vset.pattern.permute.xlu0 0
      %1235 = vperm.xlu0 %1234, %v1229
      %v1236 = vpop.permute.xlu0 %1235
      %1239 = vset.pattern.permute.xlu0 0
      %1240 = vperm.xlu0 %1239, %v1230
      %v1241 = vpop.permute.xlu0 %1240
      %1244 = vset.pattern.permute.xlu0 0
      %1245 = vperm.xlu0 %1244, %v1231
      %v1246 = vpop.permute.xlu0 %1245
      %1249 = vset.pattern.permute.xlu0 0
      %1250 = vperm.xlu0 %1249, %v1232
      %v1251 = vpop.permute.xlu0 %1250
      %v1253 = vmul.f32 %v1236, %v1120
      %v1254 = vmul.f32 %v1236, %v1121
      %v1255 = vmul.f32 %v1236, %v1122
      %v1256 = vmul.f32 %v1241, %v1123
      %v1257 = vmul.f32 %v1241, %v1124
      %v1258 = vmul.f32 %v1241, %v1125
      %v1259 = vmul.f32 %v1246, %v1126
      %v1260 = vmul.f32 %v1246, %v1127
      %v1261 = vmul.f32 %v1246, %v1128
      %v1262 = vmul.f32 %v1251, %v1129
      %v1263 = vmul.f32 %v1251, %v1130
      %v1264 = vmul.f32 %v1251, %v1131
      %1277 = vrot.lane.b32.xlu0 %v1253, 16
      %v1278 = vpop.permute.xlu0 %1277
      %1279 = vrot.lane.b32.xlu0 %v1254, 16
      %v1280 = vpop.permute.xlu0 %1279
      %1281 = vrot.lane.b32.xlu0 %v1255, 16
      %v1282 = vpop.permute.xlu0 %1281
      %1283 = vrot.lane.b32.xlu0 %v1256, 16
      %v1284 = vpop.permute.xlu0 %1283
      %1285 = vrot.lane.b32.xlu0 %v1257, 16
      %v1286 = vpop.permute.xlu0 %1285
      %1287 = vrot.lane.b32.xlu0 %v1258, 16
      %v1288 = vpop.permute.xlu0 %1287
      %1289 = vrot.lane.b32.xlu0 %v1259, 16
      %v1290 = vpop.permute.xlu0 %1289
      %1291 = vrot.lane.b32.xlu0 %v1260, 16
      %v1292 = vpop.permute.xlu0 %1291
      %1293 = vrot.lane.b32.xlu0 %v1261, 16
      %v1294 = vpop.permute.xlu0 %1293
      %1295 = vrot.lane.b32.xlu0 %v1262, 16
      %v1296 = vpop.permute.xlu0 %1295
      %1297 = vrot.lane.b32.xlu0 %v1263, 16
      %v1298 = vpop.permute.xlu0 %1297
      %1299 = vrot.lane.b32.xlu0 %v1264, 16
      %v1300 = vpop.permute.xlu0 %1299
      %vm1301 = vcmask 130048
      %v1302 = vsel %vm1301, %v1278, %v1280
      %v1303 = vsel %vm1301, %v1280, %v1282
      %v1304 = vsel %vm1301, %v1284, %v1286
      %v1305 = vsel %vm1301, %v1286, %v1288
      %v1306 = vsel %vm1301, %v1290, %v1292
      %v1307 = vsel %vm1301, %v1292, %v1294
      %v1308 = vsel %vm1301, %v1296, %v1298
      %v1309 = vsel %vm1301, %v1298, %v1300
      %v1318 = vadd.f32 %v1220, %v1302
      %v1319 = vadd.f32 %v1221, %v1303
      %v1320 = vadd.f32 %v1222, %v1304
      %v1321 = vadd.f32 %v1223, %v1305
      %v1322 = vadd.f32 %v1224, %v1306
      %v1323 = vadd.f32 %v1225, %v1307
      %v1324 = vadd.f32 %v1226, %v1308
      %v1325 = vadd.f32 %v1227, %v1309
      %s1326 = scalar_lea.vmem %s3, 64
      %v1327 = vld [vmem:[%s1326] sm:$0xff]
      %v1328 = vld [vmem:[%s1326 + $0x8] sm:$0xff]
      %v1329 = vld [vmem:[%s1326 + $0x10] sm:$0xff]
      %v1330 = vld [vmem:[%s1326 + $0x18] sm:$0xff]
      %1331 = vrot.lane.b32.xlu0 %v1120, 15
      %v1332 = vpop.permute.xlu0 %1331
      %1333 = vrot.lane.b32.xlu0 %v1121, 15
      %v1334 = vpop.permute.xlu0 %1333
      %1335 = vrot.lane.b32.xlu0 %v1122, 15
      %v1336 = vpop.permute.xlu0 %1335
      %1337 = vrot.lane.b32.xlu0 %v1123, 15
      %v1338 = vpop.permute.xlu0 %1337
      %1339 = vrot.lane.b32.xlu0 %v1124, 15
      %v1340 = vpop.permute.xlu0 %1339
      %1341 = vrot.lane.b32.xlu0 %v1125, 15
      %v1342 = vpop.permute.xlu0 %1341
      %1343 = vrot.lane.b32.xlu0 %v1126, 15
      %v1344 = vpop.permute.xlu0 %1343
      %1345 = vrot.lane.b32.xlu0 %v1127, 15
      %v1346 = vpop.permute.xlu0 %1345
      %1347 = vrot.lane.b32.xlu0 %v1128, 15
      %v1348 = vpop.permute.xlu0 %1347
      %1349 = vrot.lane.b32.xlu0 %v1129, 15
      %v1350 = vpop.permute.xlu0 %1349
      %1351 = vrot.lane.b32.xlu0 %v1130, 15
      %v1352 = vpop.permute.xlu0 %1351
      %1353 = vrot.lane.b32.xlu0 %v1131, 15
      %v1354 = vpop.permute.xlu0 %1353
      %v1355 = vsel %vm467, %v1332, %v1334
      %v1356 = vsel %vm467, %v1334, %v1336
      %v1357 = vsel %vm467, %v1338, %v1340
      %v1358 = vsel %vm467, %v1340, %v1342
      %v1359 = vsel %vm467, %v1344, %v1346
      %v1360 = vsel %vm467, %v1346, %v1348
      %v1361 = vsel %vm467, %v1350, %v1352
      %v1362 = vsel %vm467, %v1352, %v1354
      %v1371 = vsel %vm429, %v1355, 0.0
      %v1372 = vsel %vm430, %v1356, 0.0
      %v1373 = vsel %vm429, %v1357, 0.0
      %v1374 = vsel %vm430, %v1358, 0.0
      %v1375 = vsel %vm429, %v1359, 0.0
      %v1376 = vsel %vm430, %v1360, 0.0
      %v1377 = vsel %vm429, %v1361, 0.0
      %v1378 = vsel %vm430, %v1362, 0.0
      %1380 = vset.pattern.permute.xlu0 0
      %1381 = vperm.xlu0 %1380, %v1327
      %v1382 = vpop.permute.xlu0 %1381
      %1385 = vset.pattern.permute.xlu0 0
      %1386 = vperm.xlu0 %1385, %v1328
      %v1387 = vpop.permute.xlu0 %1386
      %1390 = vset.pattern.permute.xlu0 0
      %1391 = vperm.xlu0 %1390, %v1329
      %v1392 = vpop.permute.xlu0 %1391
      %1395 = vset.pattern.permute.xlu0 0
      %1396 = vperm.xlu0 %1395, %v1330
      %v1397 = vpop.permute.xlu0 %1396
      %v1399 = vmul.f32 %v1382, %v1371
      %v1400 = vmul.f32 %v1382, %v1372
      %v1401 = vmul.f32 %v1387, %v1373
      %v1402 = vmul.f32 %v1387, %v1374
      %v1403 = vmul.f32 %v1392, %v1375
      %v1404 = vmul.f32 %v1392, %v1376
      %v1405 = vmul.f32 %v1397, %v1377
      %v1406 = vmul.f32 %v1397, %v1378
      %v1407 = vadd.f32 %v1318, %v1399
      %v1408 = vadd.f32 %v1319, %v1400
      %v1409 = vadd.f32 %v1320, %v1401
      %v1410 = vadd.f32 %v1321, %v1402
      %v1411 = vadd.f32 %v1322, %v1403
      %v1412 = vadd.f32 %v1323, %v1404
      %v1413 = vadd.f32 %v1324, %v1405
      %v1414 = vadd.f32 %v1325, %v1406
      %s1415 = scalar_lea.vmem %s3, 96
      %v1416 = vld [vmem:[%s1415] sm:$0xff]
      %v1417 = vld [vmem:[%s1415 + $0x8] sm:$0xff]
      %v1418 = vld [vmem:[%s1415 + $0x10] sm:$0xff]
      %v1419 = vld [vmem:[%s1415 + $0x18] sm:$0xff]
      %1420 = vrot.lane.b32.xlu0 %v1120, 1
      %v1421 = vpop.permute.xlu0 %1420
      %1422 = vrot.lane.b32.xlu0 %v1121, 1
      %v1423 = vpop.permute.xlu0 %1422
      %1424 = vrot.lane.b32.xlu0 %v1122, 1
      %v1425 = vpop.permute.xlu0 %1424
      %1426 = vrot.lane.b32.xlu0 %v1123, 1
      %v1427 = vpop.permute.xlu0 %1426
      %1428 = vrot.lane.b32.xlu0 %v1124, 1
      %v1429 = vpop.permute.xlu0 %1428
      %1430 = vrot.lane.b32.xlu0 %v1125, 1
      %v1431 = vpop.permute.xlu0 %1430
      %1432 = vrot.lane.b32.xlu0 %v1126, 1
      %v1433 = vpop.permute.xlu0 %1432
      %1434 = vrot.lane.b32.xlu0 %v1127, 1
      %v1435 = vpop.permute.xlu0 %1434
      %1436 = vrot.lane.b32.xlu0 %v1128, 1
      %v1437 = vpop.permute.xlu0 %1436
      %1438 = vrot.lane.b32.xlu0 %v1129, 1
      %v1439 = vpop.permute.xlu0 %1438
      %1440 = vrot.lane.b32.xlu0 %v1130, 1
      %v1441 = vpop.permute.xlu0 %1440
      %1442 = vrot.lane.b32.xlu0 %v1131, 1
      %v1443 = vpop.permute.xlu0 %1442
      %v1444 = vsel %vm548, %v1421, %v1423
      %v1445 = vsel %vm548, %v1423, %v1425
      %v1446 = vsel %vm548, %v1427, %v1429
      %v1447 = vsel %vm548, %v1429, %v1431
      %v1448 = vsel %vm548, %v1433, %v1435
      %v1449 = vsel %vm548, %v1435, %v1437
      %v1450 = vsel %vm548, %v1439, %v1441
      %v1451 = vsel %vm548, %v1441, %v1443
      %v1460 = vsel %vm295, %v1444, 0.0
      %v1461 = vsel %vm296, %v1445, 0.0
      %v1462 = vsel %vm295, %v1446, 0.0
      %v1463 = vsel %vm296, %v1447, 0.0
      %v1464 = vsel %vm295, %v1448, 0.0
      %v1465 = vsel %vm296, %v1449, 0.0
      %v1466 = vsel %vm295, %v1450, 0.0
      %v1467 = vsel %vm296, %v1451, 0.0
      %1469 = vset.pattern.permute.xlu0 0
      %1470 = vperm.xlu0 %1469, %v1416
      %v1471 = vpop.permute.xlu0 %1470
      %1474 = vset.pattern.permute.xlu0 0
      %1475 = vperm.xlu0 %1474, %v1417
      %v1476 = vpop.permute.xlu0 %1475
      %1479 = vset.pattern.permute.xlu0 0
      %1480 = vperm.xlu0 %1479, %v1418
      %v1481 = vpop.permute.xlu0 %1480
      %1484 = vset.pattern.permute.xlu0 0
      %1485 = vperm.xlu0 %1484, %v1419
      %v1486 = vpop.permute.xlu0 %1485
      %v1488 = vmul.f32 %v1471, %v1460
      %v1489 = vmul.f32 %v1471, %v1461
      %v1490 = vmul.f32 %v1476, %v1462
      %v1491 = vmul.f32 %v1476, %v1463
      %v1492 = vmul.f32 %v1481, %v1464
      %v1493 = vmul.f32 %v1481, %v1465
      %v1494 = vmul.f32 %v1486, %v1466
      %v1495 = vmul.f32 %v1486, %v1467
      %v1496 = vadd.f32 %v1407, %v1488
      %v1497 = vadd.f32 %v1408, %v1489
      %v1498 = vadd.f32 %v1409, %v1490
      %v1499 = vadd.f32 %v1410, %v1491
      %v1500 = vadd.f32 %v1411, %v1492
      %v1501 = vadd.f32 %v1412, %v1493
      %v1502 = vadd.f32 %v1413, %v1494
      %v1503 = vadd.f32 %v1414, %v1495
      %s1504 = scalar_lea.vmem %s3, 128
      %v1505 = vld [vmem:[%s1504] sm:$0xff]
      %v1506 = vld [vmem:[%s1504 + $0x8] sm:$0xff]
      %v1507 = vld [vmem:[%s1504 + $0x10] sm:$0xff]
      %v1508 = vld [vmem:[%s1504 + $0x18] sm:$0xff]
      %1510 = vset.pattern.permute.xlu0 0
      %1511 = vperm.xlu0 %1510, %v1505
      %v1512 = vpop.permute.xlu0 %1511
      %1515 = vset.pattern.permute.xlu0 0
      %1516 = vperm.xlu0 %1515, %v1506
      %v1517 = vpop.permute.xlu0 %1516
      %1520 = vset.pattern.permute.xlu0 0
      %1521 = vperm.xlu0 %1520, %v1507
      %v1522 = vpop.permute.xlu0 %1521
      %1525 = vset.pattern.permute.xlu0 0
      %1526 = vperm.xlu0 %1525, %v1508
      %v1527 = vpop.permute.xlu0 %1526
      %v1529 = vmul.f32 %v1512, %v1121
      %v1530 = vmul.f32 %v1512, %v1122
      %v1531 = vmul.f32 %v1517, %v1124
      %v1532 = vmul.f32 %v1517, %v1125
      %v1533 = vmul.f32 %v1522, %v1127
      %v1534 = vmul.f32 %v1522, %v1128
      %v1535 = vmul.f32 %v1527, %v1130
      %v1536 = vmul.f32 %v1527, %v1131
      %v1537 = vadd.f32 %v1496, %v1529
      %v1538 = vadd.f32 %v1497, %v1530
      %v1539 = vadd.f32 %v1498, %v1531
      %v1540 = vadd.f32 %v1499, %v1532
      %v1541 = vadd.f32 %v1500, %v1533
      %v1542 = vadd.f32 %v1501, %v1534
      %v1543 = vadd.f32 %v1502, %v1535
      %v1544 = vadd.f32 %v1503, %v1536
      %s1545 = scalar_lea.vmem %s3, 160
      %v1546 = vld [vmem:[%s1545] sm:$0xff]
      %v1547 = vld [vmem:[%s1545 + $0x8] sm:$0xff]
      %v1548 = vld [vmem:[%s1545 + $0x10] sm:$0xff]
      %v1549 = vld [vmem:[%s1545 + $0x18] sm:$0xff]
      %v1550 = vld [vmem:[#allocation2 + $0x8] sm:$0xff]
      %v1551 = vld [vmem:[#allocation2 + $0x10] sm:$0xff]
      %v1552 = vld [vmem:[#allocation2 + $0x18] sm:$0xff]
      %v1553 = vld [vmem:[#allocation2 + $0x28] sm:$0xff]
      %v1554 = vld [vmem:[#allocation2 + $0x30] sm:$0xff]
      %v1555 = vld [vmem:[#allocation2 + $0x38] sm:$0xff]
      %v1556 = vld [vmem:[#allocation2 + $0x48] sm:$0xff]
      %v1557 = vld [vmem:[#allocation2 + $0x50] sm:$0xff]
      %v1558 = vld [vmem:[#allocation2 + $0x58] sm:$0xff]
      %v1559 = vld [vmem:[#allocation2 + $0x68] sm:$0xff]
      %v1560 = vld [vmem:[#allocation2 + $0x70] sm:$0xff]
      %v1561 = vld [vmem:[#allocation2 + $0x78] sm:$0xff]
      %1574 = vrot.lane.b32.xlu0 %v1550, 127
      %v1575 = vpop.permute.xlu0 %1574
      %1576 = vrot.lane.b32.xlu0 %v1551, 127
      %v1577 = vpop.permute.xlu0 %1576
      %1578 = vrot.lane.b32.xlu0 %v1552, 127
      %v1579 = vpop.permute.xlu0 %1578
      %1580 = vrot.lane.b32.xlu0 %v1553, 127
      %v1581 = vpop.permute.xlu0 %1580
      %1582 = vrot.lane.b32.xlu0 %v1554, 127
      %v1583 = vpop.permute.xlu0 %1582
      %1584 = vrot.lane.b32.xlu0 %v1555, 127
      %v1585 = vpop.permute.xlu0 %1584
      %1586 = vrot.lane.b32.xlu0 %v1556, 127
      %v1587 = vpop.permute.xlu0 %1586
      %1588 = vrot.lane.b32.xlu0 %v1557, 127
      %v1589 = vpop.permute.xlu0 %1588
      %1590 = vrot.lane.b32.xlu0 %v1558, 127
      %v1591 = vpop.permute.xlu0 %1590
      %1592 = vrot.lane.b32.xlu0 %v1559, 127
      %v1593 = vpop.permute.xlu0 %1592
      %1594 = vrot.lane.b32.xlu0 %v1560, 127
      %v1595 = vpop.permute.xlu0 %1594
      %1596 = vrot.lane.b32.xlu0 %v1561, 127
      %v1597 = vpop.permute.xlu0 %1596
      %v1598 = vsel %vm645, %v1575, %v1577
      %v1599 = vsel %vm645, %v1577, %v1579
      %v1600 = vsel %vm645, %v1581, %v1583
      %v1601 = vsel %vm645, %v1583, %v1585
      %v1602 = vsel %vm645, %v1587, %v1589
      %v1603 = vsel %vm645, %v1589, %v1591
      %v1604 = vsel %vm645, %v1593, %v1595
      %v1605 = vsel %vm645, %v1595, %v1597
      %v1614 = vsel %vm429, %v1598, 0.0
      %v1615 = vsel %vm430, %v1599, 0.0
      %v1616 = vsel %vm429, %v1600, 0.0
      %v1617 = vsel %vm430, %v1601, 0.0
      %v1618 = vsel %vm429, %v1602, 0.0
      %v1619 = vsel %vm430, %v1603, 0.0
      %v1620 = vsel %vm429, %v1604, 0.0
      %v1621 = vsel %vm430, %v1605, 0.0
      %1623 = vset.pattern.permute.xlu0 0
      %1624 = vperm.xlu0 %1623, %v1546
      %v1625 = vpop.permute.xlu0 %1624
      %1628 = vset.pattern.permute.xlu0 0
      %1629 = vperm.xlu0 %1628, %v1547
      %v1630 = vpop.permute.xlu0 %1629
      %1633 = vset.pattern.permute.xlu0 0
      %1634 = vperm.xlu0 %1633, %v1548
      %v1635 = vpop.permute.xlu0 %1634
      %1638 = vset.pattern.permute.xlu0 0
      %1639 = vperm.xlu0 %1638, %v1549
      %v1640 = vpop.permute.xlu0 %1639
      %v1642 = vmul.f32 %v1625, %v1614
      %v1643 = vmul.f32 %v1625, %v1615
      %v1644 = vmul.f32 %v1630, %v1616
      %v1645 = vmul.f32 %v1630, %v1617
      %v1646 = vmul.f32 %v1635, %v1618
      %v1647 = vmul.f32 %v1635, %v1619
      %v1648 = vmul.f32 %v1640, %v1620
      %v1649 = vmul.f32 %v1640, %v1621
      %v1650 = vadd.f32 %v1537, %v1642
      %v1651 = vadd.f32 %v1538, %v1643
      %v1652 = vadd.f32 %v1539, %v1644
      %v1653 = vadd.f32 %v1540, %v1645
      %v1654 = vadd.f32 %v1541, %v1646
      %v1655 = vadd.f32 %v1542, %v1647
      %v1656 = vadd.f32 %v1543, %v1648
      %v1657 = vadd.f32 %v1544, %v1649
      %s1658 = scalar_lea.vmem %s3, 192
      %v1659 = vld [vmem:[%s1658] sm:$0xff]
      %v1660 = vld [vmem:[%s1658 + $0x8] sm:$0xff]
      %v1661 = vld [vmem:[%s1658 + $0x10] sm:$0xff]
      %v1662 = vld [vmem:[%s1658 + $0x18] sm:$0xff]
      %1663 = vrot.lane.b32.xlu0 %v1550, 113
      %v1664 = vpop.permute.xlu0 %1663
      %1665 = vrot.lane.b32.xlu0 %v1551, 113
      %v1666 = vpop.permute.xlu0 %1665
      %1667 = vrot.lane.b32.xlu0 %v1552, 113
      %v1668 = vpop.permute.xlu0 %1667
      %1669 = vrot.lane.b32.xlu0 %v1553, 113
      %v1670 = vpop.permute.xlu0 %1669
      %1671 = vrot.lane.b32.xlu0 %v1554, 113
      %v1672 = vpop.permute.xlu0 %1671
      %1673 = vrot.lane.b32.xlu0 %v1555, 113
      %v1674 = vpop.permute.xlu0 %1673
      %1675 = vrot.lane.b32.xlu0 %v1556, 113
      %v1676 = vpop.permute.xlu0 %1675
      %1677 = vrot.lane.b32.xlu0 %v1557, 113
      %v1678 = vpop.permute.xlu0 %1677
      %1679 = vrot.lane.b32.xlu0 %v1558, 113
      %v1680 = vpop.permute.xlu0 %1679
      %1681 = vrot.lane.b32.xlu0 %v1559, 113
      %v1682 = vpop.permute.xlu0 %1681
      %1683 = vrot.lane.b32.xlu0 %v1560, 113
      %v1684 = vpop.permute.xlu0 %1683
      %1685 = vrot.lane.b32.xlu0 %v1561, 113
      %v1686 = vpop.permute.xlu0 %1685
      %v1687 = vsel %vm726, %v1664, %v1666
      %v1688 = vsel %vm726, %v1666, %v1668
      %v1689 = vsel %vm726, %v1670, %v1672
      %v1690 = vsel %vm726, %v1672, %v1674
      %v1691 = vsel %vm726, %v1676, %v1678
      %v1692 = vsel %vm726, %v1678, %v1680
      %v1693 = vsel %vm726, %v1682, %v1684
      %v1694 = vsel %vm726, %v1684, %v1686
      %v1703 = vsel %vm295, %v1687, 0.0
      %v1704 = vsel %vm296, %v1688, 0.0
      %v1705 = vsel %vm295, %v1689, 0.0
      %v1706 = vsel %vm296, %v1690, 0.0
      %v1707 = vsel %vm295, %v1691, 0.0
      %v1708 = vsel %vm296, %v1692, 0.0
      %v1709 = vsel %vm295, %v1693, 0.0
      %v1710 = vsel %vm296, %v1694, 0.0
      %1712 = vset.pattern.permute.xlu0 0
      %1713 = vperm.xlu0 %1712, %v1659
      %v1714 = vpop.permute.xlu0 %1713
      %1717 = vset.pattern.permute.xlu0 0
      %1718 = vperm.xlu0 %1717, %v1660
      %v1719 = vpop.permute.xlu0 %1718
      %1722 = vset.pattern.permute.xlu0 0
      %1723 = vperm.xlu0 %1722, %v1661
      %v1724 = vpop.permute.xlu0 %1723
      %1727 = vset.pattern.permute.xlu0 0
      %1728 = vperm.xlu0 %1727, %v1662
      %v1729 = vpop.permute.xlu0 %1728
      %v1731 = vmul.f32 %v1714, %v1703
      %v1732 = vmul.f32 %v1714, %v1704
      %v1733 = vmul.f32 %v1719, %v1705
      %v1734 = vmul.f32 %v1719, %v1706
      %v1735 = vmul.f32 %v1724, %v1707
      %v1736 = vmul.f32 %v1724, %v1708
      %v1737 = vmul.f32 %v1729, %v1709
      %v1738 = vmul.f32 %v1729, %v1710
      %v1739 = vadd.f32 %v1650, %v1731
      %v1740 = vadd.f32 %v1651, %v1732
      %v1741 = vadd.f32 %v1652, %v1733
      %v1742 = vadd.f32 %v1653, %v1734
      %v1743 = vadd.f32 %v1654, %v1735
      %v1744 = vadd.f32 %v1655, %v1736
      %v1745 = vadd.f32 %v1656, %v1737
      %v1746 = vadd.f32 %v1657, %v1738
      %s1747 = scalar_lea.vmem %s3, 224
      %v1748 = vld [vmem:[%s1747] sm:$0xff]
      %v1749 = vld [vmem:[%s1747 + $0x8] sm:$0xff]
      %v1750 = vld [vmem:[%s1747 + $0x10] sm:$0xff]
      %v1751 = vld [vmem:[%s1747 + $0x18] sm:$0xff]
      %1753 = vset.pattern.permute.xlu0 0
      %1754 = vperm.xlu0 %1753, %v1748
      %v1755 = vpop.permute.xlu0 %1754
      %1758 = vset.pattern.permute.xlu0 0
      %1759 = vperm.xlu0 %1758, %v1749
      %v1760 = vpop.permute.xlu0 %1759
      %1763 = vset.pattern.permute.xlu0 0
      %1764 = vperm.xlu0 %1763, %v1750
      %v1765 = vpop.permute.xlu0 %1764
      %1768 = vset.pattern.permute.xlu0 0
      %1769 = vperm.xlu0 %1768, %v1751
      %v1770 = vpop.permute.xlu0 %1769
      %v1772 = vmul.f32 %v1755, %v1550
      %v1773 = vmul.f32 %v1755, %v1551
      %v1774 = vmul.f32 %v1755, %v1552
      %v1775 = vmul.f32 %v1760, %v1553
      %v1776 = vmul.f32 %v1760, %v1554
      %v1777 = vmul.f32 %v1760, %v1555
      %v1778 = vmul.f32 %v1765, %v1556
      %v1779 = vmul.f32 %v1765, %v1557
      %v1780 = vmul.f32 %v1765, %v1558
      %v1781 = vmul.f32 %v1770, %v1559
      %v1782 = vmul.f32 %v1770, %v1560
      %v1783 = vmul.f32 %v1770, %v1561
      %1796 = vrot.lane.b32.xlu0 %v1772, 112
      %v1797 = vpop.permute.xlu0 %1796
      %1798 = vrot.lane.b32.xlu0 %v1773, 112
      %v1799 = vpop.permute.xlu0 %1798
      %1800 = vrot.lane.b32.xlu0 %v1774, 112
      %v1801 = vpop.permute.xlu0 %1800
      %1802 = vrot.lane.b32.xlu0 %v1775, 112
      %v1803 = vpop.permute.xlu0 %1802
      %1804 = vrot.lane.b32.xlu0 %v1776, 112
      %v1805 = vpop.permute.xlu0 %1804
      %1806 = vrot.lane.b32.xlu0 %v1777, 112
      %v1807 = vpop.permute.xlu0 %1806
      %1808 = vrot.lane.b32.xlu0 %v1778, 112
      %v1809 = vpop.permute.xlu0 %1808
      %1810 = vrot.lane.b32.xlu0 %v1779, 112
      %v1811 = vpop.permute.xlu0 %1810
      %1812 = vrot.lane.b32.xlu0 %v1780, 112
      %v1813 = vpop.permute.xlu0 %1812
      %1814 = vrot.lane.b32.xlu0 %v1781, 112
      %v1815 = vpop.permute.xlu0 %1814
      %1816 = vrot.lane.b32.xlu0 %v1782, 112
      %v1817 = vpop.permute.xlu0 %1816
      %1818 = vrot.lane.b32.xlu0 %v1783, 112
      %v1819 = vpop.permute.xlu0 %1818
      %vm1820 = vcmask 916480
      %v1821 = vsel %vm1820, %v1797, %v1799
      %v1822 = vsel %vm1820, %v1799, %v1801
      %v1823 = vsel %vm1820, %v1803, %v1805
      %v1824 = vsel %vm1820, %v1805, %v1807
      %v1825 = vsel %vm1820, %v1809, %v1811
      %v1826 = vsel %vm1820, %v1811, %v1813
      %v1827 = vsel %vm1820, %v1815, %v1817
      %v1828 = vsel %vm1820, %v1817, %v1819
      %v1837 = vadd.f32 %v1739, %v1821
      %v1838 = vadd.f32 %v1740, %v1822
      %v1839 = vadd.f32 %v1741, %v1823
      %v1840 = vadd.f32 %v1742, %v1824
      %v1841 = vadd.f32 %v1743, %v1825
      %v1842 = vadd.f32 %v1744, %v1826
      %v1843 = vadd.f32 %v1745, %v1827
      %v1844 = vadd.f32 %v1746, %v1828
      %s1845 = scalar_lea.vmem %s3, 256
      %v1846 = vld [vmem:[%s1845] sm:$0xff]
      %v1847 = vld [vmem:[%s1845 + $0x8] sm:$0xff]
      %v1848 = vld [vmem:[%s1845 + $0x10] sm:$0xff]
      %v1849 = vld [vmem:[%s1845 + $0x18] sm:$0xff]
      %1850 = vrot.lane.b32.xlu0 %v1550, 111
      %v1851 = vpop.permute.xlu0 %1850
      %1852 = vrot.lane.b32.xlu0 %v1551, 111
      %v1853 = vpop.permute.xlu0 %1852
      %1854 = vrot.lane.b32.xlu0 %v1552, 111
      %v1855 = vpop.permute.xlu0 %1854
      %1856 = vrot.lane.b32.xlu0 %v1553, 111
      %v1857 = vpop.permute.xlu0 %1856
      %1858 = vrot.lane.b32.xlu0 %v1554, 111
      %v1859 = vpop.permute.xlu0 %1858
      %1860 = vrot.lane.b32.xlu0 %v1555, 111
      %v1861 = vpop.permute.xlu0 %1860
      %1862 = vrot.lane.b32.xlu0 %v1556, 111
      %v1863 = vpop.permute.xlu0 %1862
      %1864 = vrot.lane.b32.xlu0 %v1557, 111
      %v1865 = vpop.permute.xlu0 %1864
      %1866 = vrot.lane.b32.xlu0 %v1558, 111
      %v1867 = vpop.permute.xlu0 %1866
      %1868 = vrot.lane.b32.xlu0 %v1559, 111
      %v1869 = vpop.permute.xlu0 %1868
      %1870 = vrot.lane.b32.xlu0 %v1560, 111
      %v1871 = vpop.permute.xlu0 %1870
      %1872 = vrot.lane.b32.xlu0 %v1561, 111
      %v1873 = vpop.permute.xlu0 %1872
      %v1874 = vsel %vm856, %v1851, %v1853
      %v1875 = vsel %vm856, %v1853, %v1855
      %v1876 = vsel %vm856, %v1857, %v1859
      %v1877 = vsel %vm856, %v1859, %v1861
      %v1878 = vsel %vm856, %v1863, %v1865
      %v1879 = vsel %vm856, %v1865, %v1867
      %v1880 = vsel %vm856, %v1869, %v1871
      %v1881 = vsel %vm856, %v1871, %v1873
      %v1890 = vsel %vm429, %v1874, 0.0
      %v1891 = vsel %vm430, %v1875, 0.0
      %v1892 = vsel %vm429, %v1876, 0.0
      %v1893 = vsel %vm430, %v1877, 0.0
      %v1894 = vsel %vm429, %v1878, 0.0
      %v1895 = vsel %vm430, %v1879, 0.0
      %v1896 = vsel %vm429, %v1880, 0.0
      %v1897 = vsel %vm430, %v1881, 0.0
      %1899 = vset.pattern.permute.xlu0 0
      %1900 = vperm.xlu0 %1899, %v1846
      %v1901 = vpop.permute.xlu0 %1900
      %1904 = vset.pattern.permute.xlu0 0
      %1905 = vperm.xlu0 %1904, %v1847
      %v1906 = vpop.permute.xlu0 %1905
      %1909 = vset.pattern.permute.xlu0 0
      %1910 = vperm.xlu0 %1909, %v1848
      %v1911 = vpop.permute.xlu0 %1910
      %1914 = vset.pattern.permute.xlu0 0
      %1915 = vperm.xlu0 %1914, %v1849
      %v1916 = vpop.permute.xlu0 %1915
      %v1918 = vmul.f32 %v1901, %v1890
      %v1919 = vmul.f32 %v1901, %v1891
      %v1920 = vmul.f32 %v1906, %v1892
      %v1921 = vmul.f32 %v1906, %v1893
      %v1922 = vmul.f32 %v1911, %v1894
      %v1923 = vmul.f32 %v1911, %v1895
      %v1924 = vmul.f32 %v1916, %v1896
      %v1925 = vmul.f32 %v1916, %v1897
      %v1926 = vadd.f32 %v1837, %v1918
      %v1927 = vadd.f32 %v1838, %v1919
      %v1928 = vadd.f32 %v1839, %v1920
      %v1929 = vadd.f32 %v1840, %v1921
      %v1930 = vadd.f32 %v1841, %v1922
      %v1931 = vadd.f32 %v1842, %v1923
      %v1932 = vadd.f32 %v1843, %v1924
      %v1933 = vadd.f32 %v1844, %v1925
      %v1934 = vld [vmem:[%s4] sm:$0xff]
      %v1935 = vld [vmem:[%s4 + $0x8] sm:$0xff]
      %v1936 = vld [vmem:[%s4 + $0x10] sm:$0xff]
      %v1937 = vld [vmem:[%s4 + $0x18] sm:$0xff]
      %1939 = vset.pattern.permute.xlu0 0
      %1940 = vperm.xlu0 %1939, %v1934
      %v1941 = vpop.permute.xlu0 %1940
      %1944 = vset.pattern.permute.xlu0 0
      %1945 = vperm.xlu0 %1944, %v1935
      %v1946 = vpop.permute.xlu0 %1945
      %1949 = vset.pattern.permute.xlu0 0
      %1950 = vperm.xlu0 %1949, %v1936
      %v1951 = vpop.permute.xlu0 %1950
      %1954 = vset.pattern.permute.xlu0 0
      %1955 = vperm.xlu0 %1954, %v1937
      %v1956 = vpop.permute.xlu0 %1955
      %v1958 = vadd.f32 %v1926, %v1941
      %v1959 = vadd.f32 %v1927, %v1941
      %v1960 = vadd.f32 %v1928, %v1946
      %v1961 = vadd.f32 %v1929, %v1946
      %v1962 = vadd.f32 %v1930, %v1951
      %v1963 = vadd.f32 %v1931, %v1951
      %v1964 = vadd.f32 %v1932, %v1956
      %v1965 = vadd.f32 %v1933, %v1956
      %v1966 = vld [vmem:[%s219] sm:$0xff]
      %v1967 = vld [vmem:[%s219 + $0x8] sm:$0xff]
      %v1968 = vld [vmem:[%s219 + $0x10] sm:$0xff]
      %v1969 = vld [vmem:[%s219 + $0x18] sm:$0xff]
      %v1970 = vld [vmem:[%s219 + $0x20] sm:$0xff]
      %v1971 = vld [vmem:[%s219 + $0x28] sm:$0xff]
      %v1972 = vld [vmem:[%s219 + $0x30] sm:$0xff]
      %v1973 = vld [vmem:[%s219 + $0x38] sm:$0xff]
      %v1974 = vadd.f32 %v1958, %v1966
      %v1975 = vadd.f32 %v1959, %v1967
      %v1976 = vadd.f32 %v1960, %v1968
      %v1977 = vadd.f32 %v1961, %v1969
      %v1978 = vadd.f32 %v1962, %v1970
      %v1979 = vadd.f32 %v1963, %v1971
      %v1980 = vadd.f32 %v1964, %v1972
      %v1981 = vadd.f32 %v1965, %v1973
      %v1982 = vmax.f32 %v1974, 0.0
      %v1983 = vmax.f32 %v1975, 0.0
      %v1984 = vmax.f32 %v1976, 0.0
      %v1985 = vmax.f32 %v1977, 0.0
      %v1986 = vmax.f32 %v1978, 0.0
      %v1987 = vmax.f32 %v1979, 0.0
      %v1988 = vmax.f32 %v1980, 0.0
      %v1989 = vmax.f32 %v1981, 0.0
      %1990 = vst [vmem:[%s224] sm:$0xff] %v1982
      %1991 = vst [vmem:[%s224 + $0x8] sm:$0xff] %v1983
      %1992 = vst [vmem:[%s224 + $0x10] sm:$0xff] %v1984
      %1993 = vst [vmem:[%s224 + $0x18] sm:$0xff] %v1985
      %1994 = vst [vmem:[%s224 + $0x20] sm:$0xff] %v1986
      %1995 = vst [vmem:[%s224 + $0x28] sm:$0xff] %v1987
      %1996 = vst [vmem:[%s224 + $0x30] sm:$0xff] %v1988
      %1997 = vst [vmem:[%s224 + $0x38] sm:$0xff] %v1989
      %p1998 = scmp.lt.s32.totalorder %s16, 1
      %s1999 = scalar_select %p1998, %s16, 1
      %s2000 = smul.addr %s1999, 8
      %s2001 = smul.addr %s2000, 8
      %s2002 = scalar_lea.vmem %s5, %s2001
      // Predicated region
      $region41: #{basic_block_forward.1} parent=39 // pred_check
        %p2003 = pneg %p144
      $region42: #{basic_block_forward.1} parent=39 // pred_check_branch
        %2005 = sbr.rel (%p2003) target = $region44
      $region43: #{basic_block_forward.1} parent=39 // pred_region
        _
      $region44: #{basic_block_forward.1} parent=39 // pred_fallthru
        _
    $region40: #{basic_block_forward.1} parent=5 // pred_fallthru
      _
    %p2006 = scmp.le.s32.totalorder 2, %s11
    // Predicated region
    $region45: #{basic_block_forward.1} parent=5 // pred_check
      %p2007 = pneg %p2006
    $region46: #{basic_block_forward.1} parent=5 // pred_check_branch
      %2009 = sbr.rel (%p2007) target = $region48
    $region47: #{basic_block_forward.1} parent=5 // pred_region
      %s2010 = ssub.s32 %s11, 2
      // Predicated region
      $region49: #{basic_block_forward.1} parent=47 // pred_check
        %p2011 = pneg %p150
      $region50: #{basic_block_forward.1} parent=47 // pred_check_branch
        %2013 = sbr.rel (%p2011) target = $region52
      $region51: #{basic_block_forward.1} parent=47 // pred_region
        %p2014 = scmp.lt.s32.totalorder %s17, 1
        %s2015 = scalar_select %p2014, %s17, 1
        %s2016 = smul.addr %s2015, 8
        %s2017 = smul.addr %s2016, 8
        %s2018 = scalar_lea.vmem %s5, %s2017
      $region52: #{basic_block_forward.1} parent=47 // pred_fallthru
        _
    $region48: #{basic_block_forward.1} parent=5 // pred_fallthru
      _
  $region6: #{basic_block_forward.1} parent=0 // loop_footer
    %s15 = sadd.s32 1, %s11
  $region7: #{basic_block_forward.1} parent=0 // loop_footer_branch
    %10 = sbr.rel target = $region3
  $region8: #{basic_block_forward.1} parent=0 // loop_exit
    _

</llo_original>
